<compile_context>
chip_gen: v7x
topology: tpu7x:2x2x1
jax: 0.10.0
libtpu: 0.0.40
codegen_flags: <defaults>
</compile_context>

<pallas_src>
import functools

import jax
import jax.numpy as jnp
from jax.experimental import pallas as pl
from jax.experimental.pallas import tpu as pltpu

BN_EPS = 1e-5


# --------------------------------------------------------------------------
# Kernel 1: E_agg = scatter_mean(h_E, dst_idx, dim=0)  ->  (N, H)
# grid = (node_blocks [parallel], edge_tiles [arbitrary reduction])
# --------------------------------------------------------------------------
def scatter_mean_kernel(n_edges, dst_ref, he_ref, eagg_ref, cnt_ref):
    nb = pl.program_id(0)
    t = pl.program_id(1)
    node_block = eagg_ref.shape[0]
    tile_e = he_ref.shape[0]
    base_edge = t * tile_e
    base_node = nb * node_block

    @pl.when(t == 0)
    def _init():
        eagg_ref[...] = jnp.zeros_like(eagg_ref)
        cnt_ref[...] = jnp.zeros_like(cnt_ref)

    dst_row = dst_ref[0]                                              # (1, TE) int32
    # Global node ids covered by this node block (sublanes) vs dst ids (lanes).
    node_ids = jax.lax.broadcasted_iota(jnp.int32, (node_block, tile_e), 0) + base_node
    # Mask off the ragged tail of the last edge tile (n_edges is static).
    valid_row = (jax.lax.broadcasted_iota(jnp.int32, (1, tile_e), 1) + base_edge) < n_edges
    maskf = jnp.logical_and(node_ids == dst_row, valid_row).astype(jnp.float32)  # (NB, TE)

    # Zero out-of-range h_E rows (OOB reads of the unpadded last tile) so the
    # MXU never sees 0 * NaN/Inf.
    valid_col = (jax.lax.broadcasted_iota(jnp.int32, (tile_e, 1), 0) + base_edge) < n_edges
    he = jnp.where(valid_col, he_ref[...], 0.0)                       # (TE, H) f32

    # Transposed one-hot scatter as a plain MXU matmul; bf16 operands
    # (one-hot is exact in bf16), f32 accumulation.
    eagg_ref[...] += jnp.dot(maskf.astype(jnp.bfloat16), he.astype(jnp.bfloat16),
                             preferred_element_type=jnp.float32)
    cnt_ref[...] += jnp.sum(maskf, axis=1, keepdims=True)             # (NB, 1) degree

    @pl.when(t == pl.num_programs(1) - 1)
    def _finalize():
        # Exact divide (runs once per node block) -> tighter parity than
        # the approximate reciprocal.
        eagg_ref[...] = eagg_ref[...] / jnp.maximum(cnt_ref[...], 1.0)


# --------------------------------------------------------------------------
# Kernel 2: h_E_out = h_E*bn_scale + gelu(gelu(z) @ W12 + b12) @ W13' + b13'
#   z = onehot(src) @ (E_agg @ W11a) + h_E @ W11b + onehot(dst) @ (E_agg @ W11c) + b11
# grid = (edge_tiles [parallel])
# --------------------------------------------------------------------------
def edge_update_kernel(src_ref, dst_ref, he_ref, aw_ref, cw_ref,
                       w11b_ref, b11_ref, w12_ref, b12_ref,
                       w13_ref, b13_ref, bn_scale_ref, out_ref):
    f32 = jnp.float32
    bf16 = jnp.bfloat16
    tile_e = he_ref.shape[0]
    n_nodes = aw_ref.shape[0]

    he = he_ref[...]                                                  # (TE, H) f32
    src = src_ref[...]                                                # (TE, 1) int32
    dst = dst_ref[...]                                                # (TE, 1) int32

    # In-kernel gather of E_agg-derived residents via one-hot MXU matmuls:
    # no (E, H) gathered intermediates ever touch HBM.
    node_iota = jax.lax.broadcasted_iota(jnp.int32, (tile_e, n_nodes), 1)
    m_src = (node_iota == src).astype(f32).astype(bf16)               # (TE, N) exact one-hot
    m_dst = (node_iota == dst).astype(f32).astype(bf16)

    z = (jnp.dot(m_src, aw_ref[...], preferred_element_type=f32)
         + jnp.dot(he.astype(bf16), w11b_ref[...], preferred_element_type=f32)
         + jnp.dot(m_dst, cw_ref[...], preferred_element_type=f32)
         + b11_ref[...])
    h = jax.nn.gelu(z, approximate=False)             # torch nn.GELU (erf)
    h = jnp.dot(h.astype(bf16), w12_ref[...], preferred_element_type=f32) + b12_ref[...]
    h = jax.nn.gelu(h, approximate=False)
    msg = jnp.dot(h.astype(bf16), w13_ref[...], preferred_element_type=f32) + b13_ref[...]

    # TODO(synk): dropout is identity and BatchNorm1d uses running statistics
    # (eval mode); training-mode batch stats / dropout masks not implemented.
    out_ref[...] = he * bn_scale_ref[...] + msg       # BN folded into W13'/b13'


# --------------------------------------------------------------------------
# Wrapper
# --------------------------------------------------------------------------
def dual_egraph_forward(h_V, h_E, edge_idx, batch_id, params, *, edge_tile=512):
    del batch_id                              # unused by the reference forward
    n_nodes = h_V.shape[0]                    # h_V only supplies the node count
    n_edges, hidden = h_E.shape
    src_idx = edge_idx[0].astype(jnp.int32)
    dst_idx = edge_idx[1].astype(jnp.int32)

    n_tiles = pl.cdiv(n_edges, edge_tile)
    e_pad = n_tiles * edge_tile
    pad = e_pad - n_edges
    # Only the tiny int32 index arrays are padded (4 B/edge); h_E and the
    # output stay unpadded — the ragged last tile is handled in-kernel.
    src_p = jnp.pad(src_idx, (0, pad))
    dst_p = jnp.pad(dst_idx, (0, pad))
    dst_tbl = dst_p.reshape(n_tiles, 1, edge_tile)    # lane-dense row per tile (kernel 1)
    src_col = src_p.reshape(e_pad, 1)                 # column layout per tile (kernel 2)
    dst_col = dst_p.reshape(e_pad, 1)

    # Node-block axis: megacore-parallel on v7x, a single block elsewhere.
    node_block = n_nodes if n_nodes <= 512 else 512
    n_node_blocks = pl.cdiv(n_nodes, node_block)

    vmem_limit = 32 * 1024 * 1024             # actual usage is only a few MiB

    # ---- kernel 1: scatter_mean over dst --------------------------------
    e_agg = pl.pallas_call(
        functools.partial(scatter_mean_kernel, n_edges),
        out_shape=jax.ShapeDtypeStruct((n_nodes, hidden), jnp.float32),
        grid_spec=pltpu.PrefetchScalarGridSpec(
            num_scalar_prefetch=0,
            grid=(n_node_blocks, n_tiles),
            in_specs=[
                pl.BlockSpec((1, 1, edge_tile), lambda nb, t: (t, 0, 0)),   # dst row
                pl.BlockSpec((edge_tile, hidden), lambda nb, t: (t, 0)),    # h_E tile
            ],
            out_specs=pl.BlockSpec((node_block, hidden), lambda nb, t: (nb, 0)),
            scratch_shapes=[pltpu.VMEM((node_block, 1), jnp.float32)],      # degrees
        ),
        compiler_params=pltpu.CompilerParams(
            dimension_semantics=("parallel", "arbitrary"),
            vmem_limit_bytes=vmem_limit),
        cost_estimate=pl.CostEstimate(
            flops=2 * e_pad * n_nodes * hidden,
            transcendentals=0,
            bytes_accessed=4 * (n_node_blocks * n_edges * hidden
                                + n_nodes * hidden + e_pad)),
    )(dst_tbl, h_E)

    # Tiny (N,H)x(H,H) pre-folds done once in f32 by XLA, streamed as bf16
    # residents to kernel 2 (removes two (TE,H)x(H,H) matmuls per tile).
    bf16 = jnp.bfloat16
    aw = (e_agg @ params["W11a"]).astype(bf16)
    cw = (e_agg @ params["W11c"]).astype(bf16)

    # Fold BatchNorm1d (eval) into the last linear + residual scale.
    bn_scale = params["bn_gamma"] * jax.lax.rsqrt(params["bn_var"] + BN_EPS)
    bn_bias = params["bn_beta"] - params["bn_mean"] * bn_scale
    w13_f = (params["W13"] * bn_scale).astype(bf16)   # column-scaled W13
    b13_f = params["b13"] * bn_scale + bn_bias

    edge_args = (
        src_col, dst_col, h_E, aw, cw,
        params["W11b"].astype(bf16), params["b11"],
        params["W12"].astype(bf16), params["b12"],
        w13_f, b13_f, bn_scale,
    )
    col_spec = pl.BlockSpec((edge_tile, 1), lambda t: (t, 0))
    tile_spec = pl.BlockSpec((edge_tile, hidden), lambda t: (t, 0))
    resident = lambda a: pl.BlockSpec(a.shape, lambda t: (0,) * a.ndim)
    in_specs = ([col_spec, col_spec, tile_spec]
                + [resident(a) for a in edge_args[3:]])

    out = pl.pallas_call(
        edge_update_kernel,
        out_shape=jax.ShapeDtypeStruct((n_edges, hidden), jnp.float32),
        grid_spec=pltpu.PrefetchScalarGridSpec(
            num_scalar_prefetch=0,
            grid=(n_tiles,),
            in_specs=in_specs,
            out_specs=tile_spec,
        ),
        compiler_params=pltpu.CompilerParams(
            dimension_semantics=("parallel",),         # independent edge tiles
            vmem_limit_bytes=vmem_limit),
        cost_estimate=pl.CostEstimate(
            flops=2 * e_pad * (2 * n_nodes * hidden + 3 * hidden * hidden),
            transcendentals=2 * e_pad * hidden,
            bytes_accessed=4 * 2 * n_edges * hidden
                           + 2 * (2 * n_nodes * hidden + 3 * hidden * hidden)),
    )(*edge_args)

    return out


# --------------------------------------------------------------------------
# Pure-JAX f32 reference (mirrors the PyTorch forward in eval mode)
# --------------------------------------------------------------------------
def dual_egraph_reference(h_V, h_E, edge_idx, batch_id, params):
    del batch_id
    n_nodes = h_V.shape[0]
    src_idx, dst_idx = edge_idx[0], edge_idx[1]
    sums = jax.ops.segment_sum(h_E, dst_idx, num_segments=n_nodes)
    cnts = jax.ops.segment_sum(jnp.ones((h_E.shape[0],), jnp.float32), dst_idx,
                               num_segments=n_nodes)
    e_agg = sums / jnp.maximum(cnts, 1.0)[:, None]
    h_ev = jnp.concatenate([e_agg[src_idx], h_E, e_agg[dst_idx]], axis=-1)
    w11 = jnp.concatenate([params["W11a"], params["W11b"], params["W11c"]], axis=0)
    gelu = lambda x: jax.nn.gelu(x, approximate=False)
    h = gelu(h_ev @ w11 + params["b11"])
    h = gelu(h @ params["W12"] + params["b12"])
    h_msg = h @ params["W13"] + params["b13"]
    x = h_E + h_msg                                       # dropout identity (eval)
    inv = jax.lax.rsqrt(params["bn_var"] + BN_EPS)
    return (x - params["bn_mean"]) * inv * params["bn_gamma"] + params["bn_beta"]


def make_params(key, hidden):
    ks = jax.random.split(key, 12)
    w = lambda k, s: (0.1 * jax.random.normal(k, s)).astype(jnp.float32)
    return {
        "W11a": w(ks[0], (hidden, hidden)),
        "W11b": w(ks[1], (hidden, hidden)),
        "W11c": w(ks[2], (hidden, hidden)),
        "b11": w(ks[3], (1, hidden)),
        "W12": w(ks[4], (hidden, hidden)), "b12": w(ks[5], (1, hidden)),
        "W13": w(ks[6], (hidden, hidden)), "b13": w(ks[7], (1, hidden)),
        # BatchNorm1d (eval mode) parameters / running statistics.
        "bn_gamma": (1.0 + 0.1 * jax.random.normal(ks[8], (1, hidden))).astype(jnp.float32),
        "bn_beta": w(ks[9], (1, hidden)),
        "bn_mean": w(ks[10], (1, hidden)),
        "bn_var": (1.0 + 0.1 * jax.random.normal(ks[11], (1, hidden)) ** 2).astype(jnp.float32),
    }


if __name__ == "__main__":
    H = 128     # num_hidden (num_in = 2*H is implied by the concat in forward)
    N = 64      # number of nodes
    E = 1000    # number of edges (not a multiple of 512 -> exercises the ragged tile)

    key = jax.random.PRNGKey(0)
    k_hv, k_he, k_src, k_dst, k_par = jax.random.split(key, 5)
    h_V = jax.random.normal(k_hv, (N, H), jnp.float32)   # only node count is used
    h_E = jax.random.normal(k_he, (E, H), jnp.float32)
    src_idx = jax.random.randint(k_src, (E,), 0, N, jnp.int32)
    dst_idx = jax.random.randint(k_dst, (E,), 0, N, jnp.int32)
    edge_idx = jnp.stack([src_idx, dst_idx], axis=0)
    batch_id = jnp.zeros((N,), jnp.int32)
    params = make_params(k_par, H)

    out = dual_egraph_forward(h_V, h_E, edge_idx, batch_id, params)
    out = jax.block_until_ready(out)

    ref = dual_egraph_reference(h_V, h_E, edge_idx, batch_id, params)
    assert out.shape == (E, H)
    scale = float(jnp.max(jnp.abs(ref)))
    # bf16 MXU operands with f32 accumulation -> ~1% level error vs f32 reference.
    ok = bool(jnp.allclose(out, ref, atol=3e-2 * scale, rtol=3e-2))
    assert ok, (f"mismatch vs reference: max abs err "
                f"{float(jnp.max(jnp.abs(out - ref)))}, ref scale {scale}")
    print("KERNEL_OK")
</pallas_src>

<mosaic_0001>
module attributes {stable_mosaic.version = 11 : i64} {
  func.func @scatter_mean_kernel(%arg0: i32, %arg1: i32, %arg2: memref<1x1x512xi32, #tpu.memory_space<vmem>>, %arg3: memref<512x128xf32, #tpu.memory_space<vmem>>, %arg4: memref<64x128xf32, #tpu.memory_space<vmem>>, %arg5: memref<64x1xf32, #tpu.memory_space<vmem>>) attributes {dimension_semantics = [#tpu.dimension_semantics<parallel>, #tpu.dimension_semantics<arbitrary>], iteration_bounds = array<i64: 1, 2>, scalar_prefetch = 0 : i64, scratch_operands = 1 : i64, tpu.core_type = #tpu.core_type<tc>, window_params = [{transform_indices = @transform_0, window_bounds = array<i64: 1, 1, 512>}, {transform_indices = @transform_1, window_bounds = array<i64: 512, 128>}, {transform_indices = @transform_2, window_bounds = array<i64: 64, 128>}]} {
    %c512_i32 = arith.constant 512 : i32
    %0 = arith.muli %arg1, %c512_i32 : i32
    %c64_i32 = arith.constant 64 : i32
    %1 = arith.muli %arg0, %c64_i32 : i32
    %c0_i32 = arith.constant 0 : i32
    %2 = arith.cmpi eq, %arg1, %c0_i32 : i32
    %3 = arith.extui %2 : i1 to i32
    %c0_i32_0 = arith.constant 0 : i32
    %4 = arith.cmpi ne, %3, %c0_i32_0 : i32
    scf.if %4 {
      %cst_17 = arith.constant 0.000000e+00 : f32
      %45 = vector.broadcast %cst_17 : f32 to vector<64x128xf32>
      %c0_18 = arith.constant 0 : index
      %c0_19 = arith.constant 0 : index
      %46 = vector.load %arg4[%c0_18, %c0_19] : memref<64x128xf32, #tpu.memory_space<vmem>>, vector<64x128xf32>
      tpu.vector_store %arg4[%c0_18, %c0_19], %45 {strides = array<i32>} : memref<64x128xf32, #tpu.memory_space<vmem>>, vector<64x128xf32>,
      %cst_20 = arith.constant 0.000000e+00 : f32
      %47 = vector.broadcast %cst_20 : f32 to vector<64x1xf32>
      %c0_21 = arith.constant 0 : index
      %c0_22 = arith.constant 0 : index
      %48 = vector.load %arg5[%c0_21, %c0_22] : memref<64x1xf32, #tpu.memory_space<vmem>>, vector<64x1xf32>
      tpu.vector_store %arg5[%c0_21, %c0_22], %47 {strides = array<i32>} : memref<64x1xf32, #tpu.memory_space<vmem>>, vector<64x1xf32>,
    } else {
    }
    %c0 = arith.constant 0 : index
    %c0_1 = arith.constant 0 : index
    %c0_2 = arith.constant 0 : index
    %5 = vector.load %arg2[%c0, %c0_1, %c0_2] : memref<1x1x512xi32, #tpu.memory_space<vmem>>, vector<1x1x512xi32>
    %6 = vector.shape_cast %5 : vector<1x1x512xi32> to vector<1x512xi32>
    %7 = tpu.iota {dimensions = array<i32: 0>} : vector<64x512xi32>
    %8 = vector.broadcast %1 : i32 to vector<64x512xi32>
    %9 = arith.addi %7, %8 : vector<64x512xi32>
    %10 = tpu.iota {dimensions = array<i32: 1>} : vector<1x512xi32>
    %11 = vector.broadcast %0 : i32 to vector<1x512xi32>
    %12 = arith.addi %10, %11 : vector<1x512xi32>
    %c1000_i32 = arith.constant 1000 : i32
    %13 = vector.broadcast %c1000_i32 : i32 to vector<1x512xi32>
    %14 = arith.cmpi slt, %12, %13 : vector<1x512xi32>
    %15 = vector.broadcast %6 : vector<1x512xi32> to vector<64x512xi32>
    %16 = arith.cmpi eq, %9, %15 : vector<64x512xi32>
    %17 = vector.broadcast %14 : vector<1x512xi1> to vector<64x512xi1>
    %18 = arith.andi %16, %17 : vector<64x512xi1>
    %19 = arith.extui %18 : vector<64x512xi1> to vector<64x512xi32>
    %20 = arith.sitofp %19 : vector<64x512xi32> to vector<64x512xf32>
    %21 = tpu.iota {dimensions = array<i32: 0>} : vector<512x1xi32>
    %22 = vector.broadcast %0 : i32 to vector<512x1xi32>
    %23 = arith.addi %21, %22 : vector<512x1xi32>
    %c1000_i32_3 = arith.constant 1000 : i32
    %24 = vector.broadcast %c1000_i32_3 : i32 to vector<512x1xi32>
    %25 = arith.cmpi slt, %23, %24 : vector<512x1xi32>
    %c0_4 = arith.constant 0 : index
    %c0_5 = arith.constant 0 : index
    %26 = vector.load %arg3[%c0_4, %c0_5] : memref<512x128xf32, #tpu.memory_space<vmem>>, vector<512x128xf32>
    %cst = arith.constant 0.000000e+00 : f32
    %27 = vector.shape_cast %25 : vector<512x1xi1> to vector<512x1xi1>
    %28 = vector.broadcast %27 : vector<512x1xi1> to vector<512x128xi1>
    %29 = vector.broadcast %cst : f32 to vector<512x128xf32>
    %30 = arith.select %28, %26, %29 : vector<512x128xi1>, vector<512x128xf32>
    %c0_6 = arith.constant 0 : index
    %c0_7 = arith.constant 0 : index
    %31 = vector.load %arg4[%c0_6, %c0_7] : memref<64x128xf32, #tpu.memory_space<vmem>>, vector<64x128xf32>
    %32 = arith.truncf %20 : vector<64x512xf32> to vector<64x512xbf16>
    %33 = arith.truncf %30 : vector<512x128xf32> to vector<512x128xbf16>
    %cst_8 = arith.constant dense<0.000000e+00> : vector<64x128xf32>
    %34 = tpu.matmul %32, %33, %cst_8 {dimension_numbers = #tpu.dot_dimension_numbers<[1], [0], [0], [1], [0, 0, 1, 1], [], []>} : vector<64x512xbf16>, vector<512x128xbf16>, vector<64x128xf32> -> vector<64x128xf32>
    %35 = arith.addf %31, %34 : vector<64x128xf32>
    %c0_9 = arith.constant 0 : index
    %c0_10 = arith.constant 0 : index
    %36 = vector.load %arg4[%c0_9, %c0_10] : memref<64x128xf32, #tpu.memory_space<vmem>>, vector<64x128xf32>
    tpu.vector_store %arg4[%c0_9, %c0_10], %35 {strides = array<i32>} : memref<64x128xf32, #tpu.memory_space<vmem>>, vector<64x128xf32>,
    %c0_11 = arith.constant 0 : index
    %c0_12 = arith.constant 0 : index
    %37 = vector.load %arg5[%c0_11, %c0_12] : memref<64x1xf32, #tpu.memory_space<vmem>>, vector<64x1xf32>
    %cst_13 = arith.constant dense<0.000000e+00> : vector<64xf32>
    %38 = vector.multi_reduction <add>, %20, %cst_13 [1] : vector<64x512xf32> to vector<64xf32>
    %39 = vector.shape_cast %38 : vector<64xf32> to vector<64x1xf32>
    %40 = arith.addf %37, %39 : vector<64x1xf32>
    %c0_14 = arith.constant 0 : index
    %c0_15 = arith.constant 0 : index
    %41 = vector.load %arg5[%c0_14, %c0_15] : memref<64x1xf32, #tpu.memory_space<vmem>>, vector<64x1xf32>
    tpu.vector_store %arg5[%c0_14, %c0_15], %40 {strides = array<i32>} : memref<64x1xf32, #tpu.memory_space<vmem>>, vector<64x1xf32>,
    %c1_i32 = arith.constant 1 : i32
    %42 = arith.cmpi eq, %arg1, %c1_i32 : i32
    %43 = arith.extui %42 : i1 to i32
    %c0_i32_16 = arith.constant 0 : i32
    %44 = arith.cmpi ne, %43, %c0_i32_16 : i32
    scf.if %44 {
      %c0_17 = arith.constant 0 : index
      %c0_18 = arith.constant 0 : index
      %45 = vector.load %arg4[%c0_17, %c0_18] : memref<64x128xf32, #tpu.memory_space<vmem>>, vector<64x128xf32>
      %c0_19 = arith.constant 0 : index
      %c0_20 = arith.constant 0 : index
      %46 = vector.load %arg5[%c0_19, %c0_20] : memref<64x1xf32, #tpu.memory_space<vmem>>, vector<64x1xf32>
      %cst_21 = arith.constant 1.000000e+00 : f32
      %47 = vector.broadcast %cst_21 : f32 to vector<64x1xf32>
      %48 = arith.maximumf %46, %47 : vector<64x1xf32>
      %49 = vector.broadcast %48 : vector<64x1xf32> to vector<64x128xf32>
      %50 = arith.divf %45, %49 : vector<64x128xf32>
      %c0_22 = arith.constant 0 : index
      %c0_23 = arith.constant 0 : index
      %51 = vector.load %arg4[%c0_22, %c0_23] : memref<64x128xf32, #tpu.memory_space<vmem>>, vector<64x128xf32>
      tpu.vector_store %arg4[%c0_22, %c0_23], %50 {strides = array<i32>} : memref<64x128xf32, #tpu.memory_space<vmem>>, vector<64x128xf32>,
    } else {
    }
    return
  }
  func.func @transform_0(%arg0: i32, %arg1: i32) -> (i32, i32, i32) {
    %c0_i32 = arith.constant 0 : i32
    %c0_i32_0 = arith.constant 0 : i32
    %c0_i32_1 = arith.constant 0 : i32
    return %arg1, %c0_i32, %c0_i32_0 : i32, i32, i32
  }
  func.func @transform_1(%arg0: i32, %arg1: i32) -> (i32, i32) {
    %c0_i32 = arith.constant 0 : i32
    %c0_i32_0 = arith.constant 0 : i32
    return %arg1, %c0_i32 : i32, i32
  }
  func.func @transform_2(%arg0: i32, %arg1: i32) -> (i32, i32) {
    %c0_i32 = arith.constant 0 : i32
    %c0_i32_0 = arith.constant 0 : i32
    return %arg0, %c0_i32 : i32, i32
  }
}

</mosaic_0001>

<llo_original>
// kernel: tpu_custom_call.1
$region0: #{tpu_custom_call.1}
  #allocation0 [shape = 'u32[]', space=smem, size = 0x4, offset = 0x4, fixed_abs, tag = 'smem constant byte address 0x4 - core index']
  #allocation1 [shape = 'u32[144,128]{1,0:T(1,128)}', space=vmem, size = 0x12000, scoped, tag = 'internal scratch']
  #allocation2 [shape = 'f32[64,1]{1,0:T(8,128)}', space=vmem, size = 0x8000, scoped, tag = 'scratch operand']
  %s0 = inlined_call_operand.hbm [shape: s32[2,1,512], index: 0, kind: input, shape index: {}]
  %s1 = inlined_call_operand.hbm [shape: f32[1000,128], index: 1, kind: input, shape index: {}]
  %s2 = inlined_call_operand.hbm [shape: f32[64,128], index: 2, kind: output, shape index: {}]
  %s3 = sld [smem:[#allocation0]]
  $region57: #{tpu_custom_call.1} parent=0
    _
  %s5 = ssub.s32 1, %s3
  %s6 = scalar_select 0, %s5, %s3
  $region1: #{tpu_custom_call.1} parent=0
    #allocation3 [shape = 'u8[4096]{0}', space=vmem, size = 0x1000, scoped, tag = 'input window, operand 0']
    #allocation4 [shape = 's32[2]{0}', space=sflag, size = 0x8, scoped, tag = 'scoped memory for tpu_custom_call.1']
    #allocation5 [shape = 's32[2]{0}', space=sflag, size = 0x8, scoped, tag = 'scoped memory for tpu_custom_call.1']
    #allocation6 [shape = 'u8[524288]{0}', space=vmem, size = 0x80000, scoped, tag = 'input window, operand 1']
    #allocation7 [shape = 's32[2]{0}', space=sflag, size = 0x8, scoped, tag = 'scoped memory for tpu_custom_call.1']
    #allocation8 [shape = 'u8[32768]{0}', space=vmem, size = 0x8000, scoped, tag = 'output window, operand 0, single buffered']
    %7 = vsyncpa [#allocation4], 0
    %s8 = scalar_lea.sflag [#allocation4], 1
    %9 = vsyncpa %s8, 0
    %10 = vsyncpa [#allocation7], 0
    %s11 = scalar_lea.sflag [#allocation7], 1
    %12 = vsyncpa %s11, 0
    %13 = vsyncpa [#allocation5], 0
    loop: start=0, step=1, limit=4
    $region2: #{tpu_custom_call.1} parent=1 // loop_pre_header
      _
    $region3: #{tpu_custom_call.1} parent=1 // loop_header
      %s15 = sphi 0, %s19
      %p16 = scmp.ge.s32.totalorder %s15, 4
      %s22 = sphi 0, %s34
      %s23 = sphi 0, %s30
      %s24 = sphi 0, %s22
      %s25 = sphi 0, %s23
      %s26 = sphi 0, %s24
      %s27 = sphi 0, %s25
      %s37 = sphi 0, %s39
      %s40 = sphi 0, %s37
      %s41 = sphi 0, %s40
      %s57 = sphi 0, %s41
      %s63 = sphi 0, %s65
      %s66 = sphi 0, %s63
      %s67 = sphi 0, %s66
      %s83 = sphi 0, %s67
      %s89 = sphi 0, %s91
      %s92 = sphi 0, %s89
      %s93 = sphi 0, %s92
      %s109 = sphi 0, %s93
    $region4: #{tpu_custom_call.1} parent=1 // loop_header_branch
      %18 = sbr.rel (%p16) target = $region8
    $region5: #{tpu_custom_call.1} parent=1 // loop_body
      %s20 = ssub.s32 %s15, 1
      %s21 = ssub.s32 %s15, 2
      %s28 = sadd.s32 1, %s23
      %p29 = scmp.ge.s32.totalorder %s28, 2
      %s30 = scalar_select %p29, 0, %s28
      %s31 = sadd.s32 1, %s22
      %s32 = scalar_select %p29, %s31, %s22
      %p33 = scmp.ge.s32.totalorder %s32, 1
      %s34 = scalar_select %p33, 0, %s32
      %s35 = ssub.s32 %s23, %s30
      %p36 = scmp.eq.s32.totalorder %s35, 0
      %s38 = sadd.s32 %s37, 1
      %s39 = scalar_select %p36, %s37, %s38
      %p42 = pneg %p36
      %p43 = scmp.eq.s32.totalorder %s15, 1
      %p44 = por %p42, %p43
      %p45 = scmp.ne.s32.totalorder %s37, %s40
      %p46 = scmp.eq.s32.totalorder %s15, 0
      %p47 = por %p45, %p46
      %p48 = scmp.ne.s32.totalorder %s37, %s40
      %p49 = scmp.eq.s32.totalorder %s20, 1
      %p50 = por %p48, %p49
      %p51 = scmp.ne.s32.totalorder %s40, %s41
      %p52 = scmp.eq.s32.totalorder %s20, 0
      %p53 = por %p51, %p52
      %p54 = scmp.ne.s32.totalorder %s40, %s41
      %p55 = scmp.eq.s32.totalorder %s21, 1
      %p56 = por %p54, %p55
      %p58 = scmp.ne.s32.totalorder %s41, %s57
      %p59 = scmp.eq.s32.totalorder %s21, 0
      %p60 = por %p58, %p59
      %s61 = ssub.s32 %s23, %s30
      %p62 = scmp.eq.s32.totalorder %s61, 0
      %s64 = sadd.s32 %s63, 1
      %s65 = scalar_select %p62, %s63, %s64
      %p68 = pneg %p62
      %p69 = scmp.eq.s32.totalorder %s15, 1
      %p70 = por %p68, %p69
      %p71 = scmp.ne.s32.totalorder %s63, %s66
      %p72 = scmp.eq.s32.totalorder %s15, 0
      %p73 = por %p71, %p72
      %p74 = scmp.ne.s32.totalorder %s63, %s66
      %p75 = scmp.eq.s32.totalorder %s20, 1
      %p76 = por %p74, %p75
      %p77 = scmp.ne.s32.totalorder %s66, %s67
      %p78 = scmp.eq.s32.totalorder %s20, 0
      %p79 = por %p77, %p78
      %p80 = scmp.ne.s32.totalorder %s66, %s67
      %p81 = scmp.eq.s32.totalorder %s21, 1
      %p82 = por %p80, %p81
      %p84 = scmp.ne.s32.totalorder %s67, %s83
      %p85 = scmp.eq.s32.totalorder %s21, 0
      %p86 = por %p84, %p85
      %s87 = ssub.s32 %s22, %s34
      %p88 = scmp.eq.s32.totalorder %s87, 0
      %s90 = sadd.s32 %s89, 1
      %s91 = scalar_select %p88, %s89, %s90
      %p94 = pneg %p88
      %p95 = scmp.eq.s32.totalorder %s15, 1
      %p96 = por %p94, %p95
      %p97 = scmp.ne.s32.totalorder %s89, %s92
      %p98 = scmp.eq.s32.totalorder %s15, 0
      %p99 = por %p97, %p98
      %p100 = scmp.ne.s32.totalorder %s89, %s92
      %p101 = scmp.eq.s32.totalorder %s20, 1
      %p102 = por %p100, %p101
      %p103 = scmp.ne.s32.totalorder %s92, %s93
      %p104 = scmp.eq.s32.totalorder %s20, 0
      %p105 = por %p103, %p104
      %p106 = scmp.ne.s32.totalorder %s92, %s93
      %p107 = scmp.eq.s32.totalorder %s21, 1
      %p108 = por %p106, %p107
      %p110 = scmp.ne.s32.totalorder %s93, %s109
      %p111 = scmp.eq.s32.totalorder %s21, 0
      %p112 = por %p110, %p111
      %p113 = scmp.le.s32.totalorder 1, %s15
      %p114 = scmp.lt.s32.totalorder %s15, 3
      %p115 = pnand %p113, %p114
      %p116 = pneg %p115
      // Predicated region
      $region9: #{tpu_custom_call.1} parent=5 // pred_check
        _
      $region10: #{tpu_custom_call.1} parent=5 // pred_check_branch
        %118 = sbr.rel (%p115) target = $region12
      $region11: #{tpu_custom_call.1} parent=5 // pred_region
        %s119 = ssub.s32 %s15, 1
      $region12: #{tpu_custom_call.1} parent=5 // pred_fallthru
        _
      %p120 = scmp.lt.s32.totalorder %s15, 2
      // Predicated region
      $region13: #{tpu_custom_call.1} parent=5 // pred_check
        %p121 = pneg %p120
      $region14: #{tpu_custom_call.1} parent=5 // pred_check_branch
        %123 = sbr.rel (%p121) target = $region16
      $region15: #{tpu_custom_call.1} parent=5 // pred_region
        // Predicated region
        $region17: #{tpu_custom_call.1} parent=15 // pred_check
          %p124 = pneg %p47
        $region18: #{tpu_custom_call.1} parent=15 // pred_check_branch
          %126 = sbr.rel (%p124) target = $region20
        $region19: #{tpu_custom_call.1} parent=15 // pred_region
          %s127 = sand.u32 %s37, 1
          %s128 = scalar_lea.sflag [#allocation4], %s127
          %s129 = sand.u32 %s37, 1
          %s130 = smul.addr %s129, 4
          %s131 = scalar_lea.vmem [#allocation3], %s130
          %s133 = ssub.s32 64, 64
          %134 = vsyncadd %s128, %s133
          %s135 = smul.addr %s23, 4
          %s136 = smul.addr %s135, 16
          %s137 = scalar_lea.hbm %s0, %s136
          %s139 = sshll.u32 %s131, 4
          %s140 = int_to_ptr.vmem [resolvable:$true] %s139
          %142 = dma.hbm_to_vmem [thread:$0]  %s137, 64, %s140, %s128
        $region20: #{tpu_custom_call.1} parent=15 // pred_fallthru
          _
        // Predicated region
        $region21: #{tpu_custom_call.1} parent=15 // pred_check
          %p143 = pneg %p73
        $region22: #{tpu_custom_call.1} parent=15 // pred_check_branch
          %145 = sbr.rel (%p143) target = $region24
        $region23: #{tpu_custom_call.1} parent=15 // pred_region
          %s146 = sand.u32 %s63, 1
          %s147 = scalar_lea.sflag [#allocation7], %s146
          %s148 = sand.u32 %s63, 1
          %s149 = smul.addr %s148, 512
          %s150 = scalar_lea.vmem [#allocation6], %s149
          %s151 = smul.u32 64, %s23
          %s152 = ssub.s32 125, %s151
          %p153 = scmp.lt.s32.totalorder %s152, 64
          %s154 = scalar_select %p153, %s152, 64
          %s155 = smul.u32 128, %s154
          %s157 = ssub.s32 8192, %s155
          %158 = vsyncadd %s147, %s157
          %p159 = scmp.ne.s32.totalorder 0, %s155
          %s160 = smul.addr %s151, 128
          %s161 = scalar_lea.hbm %s1, %s160
          %s162 = smul.u32 8, %s154
          %s163 = sshll.u32 %s150, 4
          %s164 = int_to_ptr.vmem [resolvable:$true] %s163
          %s165 = sshll.u32 %s162, 4
          %169 = dma.hbm_to_vmem [thread:$0]  (%p159), %s161, %s165, %s164, %s147, 128, 128, 8
        $region24: #{tpu_custom_call.1} parent=15 // pred_fallthru
          _
      $region16: #{tpu_custom_call.1} parent=5 // pred_fallthru
        _
      %p170 = scmp.le.s32.totalorder 1, %s15
      %p171 = scmp.lt.s32.totalorder %s15, 3
      %p172 = pnand %p170, %p171
      %p173 = pneg %p172
      // Predicated region
      $region25: #{tpu_custom_call.1} parent=5 // pred_check
        _
      $region26: #{tpu_custom_call.1} parent=5 // pred_check_branch
        %175 = sbr.rel (%p172) target = $region28
      $region27: #{tpu_custom_call.1} parent=5 // pred_region
        %s176 = ssub.s32 %s15, 1
        %s177 = sand.u32 %s40, 1
        %s178 = scalar_lea.sflag [#allocation4], %s177
        %s179 = sand.u32 %s40, 1
        %s180 = smul.addr %s179, 4
        %s181 = scalar_lea.vmem [#allocation3], %s180
        // Predicated region
        $region29: #{tpu_custom_call.1} parent=27 // pred_check
          %p182 = pneg %p53
        $region30: #{tpu_custom_call.1} parent=27 // pred_check_branch
          %184 = sbr.rel (%p182) target = $region32
        $region31: #{tpu_custom_call.1} parent=27 // pred_region
          %185 = dma.done %s178, 64
        $region32: #{tpu_custom_call.1} parent=27 // pred_fallthru
          _
        %s186 = sand.u32 %s66, 1
        %s187 = scalar_lea.sflag [#allocation7], %s186
        %s188 = sand.u32 %s66, 1
        %s189 = smul.addr %s188, 512
        %s190 = scalar_lea.vmem [#allocation6], %s189
        // Predicated region
        $region33: #{tpu_custom_call.1} parent=27 // pred_check
          %p191 = pneg %p79
        $region34: #{tpu_custom_call.1} parent=27 // pred_check_branch
          %193 = sbr.rel (%p191) target = $region36
        $region35: #{tpu_custom_call.1} parent=27 // pred_region
          %194 = dma.done %s187, 8192
        $region36: #{tpu_custom_call.1} parent=27 // pred_fallthru
          _
        %s195 = sand.u32 %s40, 1
        %s196 = scalar_lea.sflag [#allocation4], %s195
        %s197 = sand.u32 %s40, 1
        %s198 = smul.addr %s197, 4
        %s199 = scalar_lea.vmem [#allocation3], %s198
        %p200 = pneg %p53
        %p201 = pneg %p50
        %s202 = sand.u32 %s66, 1
        %s203 = scalar_lea.sflag [#allocation7], %s202
        %s204 = sand.u32 %s66, 1
        %s205 = smul.addr %s204, 512
        %s206 = scalar_lea.vmem [#allocation6], %s205
        %p207 = pneg %p79
        %p208 = pneg %p76
        %p209 = pneg %p105
        %p210 = pneg %p102
        %s211 = smul.u32 64, %s25
        %s212 = ssub.s32 125, %s211
        %p213 = scmp.lt.s32.totalorder %s212, 64
        %s214 = scalar_select %p213, %s212, 64
        %s215 = smul.u32 128, %s214
        %s216 = smul.u32 8, %s24
        %s218 = smul.u32 %s25, 512
        %s219 = smul.u32 %s24, 64
        %p220 = scmp.eq.s32.totalorder %s25, 0
        // Predicated region
        $region37: #{tpu_custom_call.1} parent=27 // pred_check
          %p221 = pneg %p220
        $region38: #{tpu_custom_call.1} parent=27 // pred_check_branch
          %223 = sbr.rel (%p221) target = $region40
        $region39: #{tpu_custom_call.1} parent=27 // pred_region
          %224 = vst [vmem:[#allocation8] sm:$0xff] 0.0
          %225 = vst [vmem:[#allocation8 + $0x8] sm:$0xff] 0.0
          %226 = vst [vmem:[#allocation8 + $0x10] sm:$0xff] 0.0
          %227 = vst [vmem:[#allocation8 + $0x18] sm:$0xff] 0.0
          %228 = vst [vmem:[#allocation8 + $0x20] sm:$0xff] 0.0
          %229 = vst [vmem:[#allocation8 + $0x28] sm:$0xff] 0.0
          %230 = vst [vmem:[#allocation8 + $0x30] sm:$0xff] 0.0
          %231 = vst [vmem:[#allocation8 + $0x38] sm:$0xff] 0.0
          %vm232 = vcmask 7168
          %233 = vst.msk [vmem:[#allocation2] sm:$0xff] %vm232, 0.0
          %234 = vst.msk [vmem:[#allocation2 + $0x8] sm:$0xff] %vm232, 0.0
          %235 = vst.msk [vmem:[#allocation2 + $0x10] sm:$0xff] %vm232, 0.0
          %236 = vst.msk [vmem:[#allocation2 + $0x18] sm:$0xff] %vm232, 0.0
          %237 = vst.msk [vmem:[#allocation2 + $0x20] sm:$0xff] %vm232, 0.0
          %238 = vst.msk [vmem:[#allocation2 + $0x28] sm:$0xff] %vm232, 0.0
          %239 = vst.msk [vmem:[#allocation2 + $0x30] sm:$0xff] %vm232, 0.0
          %240 = vst.msk [vmem:[#allocation2 + $0x38] sm:$0xff] %vm232, 0.0
        $region40: #{tpu_custom_call.1} parent=27 // pred_fallthru
          _
        %v241 = vld [vmem:[%s181] sm:$0xf]
        %v242 = vlaneseq
        %v243 = vshrl.u32 %v242, 7
        %v244 = vadd.s32 %v243, 8
        %v245 = vadd.s32 %v243, 16
        %v246 = vadd.s32 %v243, 24
        %v247 = vadd.s32 %v243, 32
        %v248 = vadd.s32 %v243, 40
        %v249 = vadd.s32 %v243, 48
        %v250 = vadd.s32 %v243, 56
        %v251 = vstv %s219
        %v252 = vadd.s32 %v243, %v251
        %v253 = vadd.s32 %v244, %v251
        %v254 = vadd.s32 %v245, %v251
        %v255 = vadd.s32 %v246, %v251
        %v256 = vadd.s32 %v247, %v251
        %v257 = vadd.s32 %v248, %v251
        %v258 = vadd.s32 %v249, %v251
        %v259 = vadd.s32 %v250, %v251
        %v260 = vlaneseq
        %v261 = vand.u32 %v260, 127
        %v262 = vadd.s32 %v261, 128
        %v263 = vadd.s32 %v261, 256
        %v264 = vadd.s32 %v261, 384
        %v265 = vstv %s218
        %v266 = vadd.s32 %v261, %v265
        %v267 = vadd.s32 %v262, %v265
        %v268 = vadd.s32 %v263, %v265
        %v269 = vadd.s32 %v264, %v265
        %vm270 = vcmp.lt.s32.totalorder %v266, 1000
        %vm271 = vcmp.lt.s32.totalorder %v267, 1000
        %vm272 = vcmp.lt.s32.totalorder %v268, 1000
        %vm273 = vcmp.lt.s32.totalorder %v269, 1000
        %v274 = vlaneseq
        %v275 = vshrl.u32 %v274, 7
        %v276 = vsub.s32 0, %v275
        %v277 = vrot.slane %v241, %v276
        %v278 = vlaneseq
        %v279 = vshrl.u32 %v278, 7
        %v280 = vsub.s32 1, %v279
        %v281 = vrot.slane %v241, %v280
        %v282 = vlaneseq
        %v283 = vshrl.u32 %v282, 7
        %v284 = vsub.s32 2, %v283
        %v285 = vrot.slane %v241, %v284
        %v286 = vlaneseq
        %v287 = vshrl.u32 %v286, 7
        %v288 = vsub.s32 3, %v287
        %v289 = vrot.slane %v241, %v288
        %vm290 = vcmp.eq.s32.totalorder %v252, %v277
        %vm291 = vcmp.eq.s32.totalorder %v252, %v281
        %vm292 = vcmp.eq.s32.totalorder %v252, %v285
        %vm293 = vcmp.eq.s32.totalorder %v252, %v289
        %vm294 = vcmp.eq.s32.totalorder %v253, %v277
        %vm295 = vcmp.eq.s32.totalorder %v253, %v281
        %vm296 = vcmp.eq.s32.totalorder %v253, %v285
        %vm297 = vcmp.eq.s32.totalorder %v253, %v289
        %vm298 = vcmp.eq.s32.totalorder %v254, %v277
        %vm299 = vcmp.eq.s32.totalorder %v254, %v281
        %vm300 = vcmp.eq.s32.totalorder %v254, %v285
        %vm301 = vcmp.eq.s32.totalorder %v254, %v289
        %vm302 = vcmp.eq.s32.totalorder %v255, %v277
        %vm303 = vcmp.eq.s32.totalorder %v255, %v281
        %vm304 = vcmp.eq.s32.totalorder %v255, %v285
        %vm305 = vcmp.eq.s32.totalorder %v255, %v289
        %vm306 = vcmp.eq.s32.totalorder %v256, %v277
        %vm307 = vcmp.eq.s32.totalorder %v256, %v281
        %vm308 = vcmp.eq.s32.totalorder %v256, %v285
        %vm309 = vcmp.eq.s32.totalorder %v256, %v289
        %vm310 = vcmp.eq.s32.totalorder %v257, %v277
        %vm311 = vcmp.eq.s32.totalorder %v257, %v281
        %vm312 = vcmp.eq.s32.totalorder %v257, %v285
        %vm313 = vcmp.eq.s32.totalorder %v257, %v289
        %vm314 = vcmp.eq.s32.totalorder %v258, %v277
        %vm315 = vcmp.eq.s32.totalorder %v258, %v281
        %vm316 = vcmp.eq.s32.totalorder %v258, %v285
        %vm317 = vcmp.eq.s32.totalorder %v258, %v289
        %vm318 = vcmp.eq.s32.totalorder %v259, %v277
        %vm319 = vcmp.eq.s32.totalorder %v259, %v281
        %vm320 = vcmp.eq.s32.totalorder %v259, %v285
        %vm321 = vcmp.eq.s32.totalorder %v259, %v289
        %v322 = vsel %vm270, 1, 0
        %v323 = vsel %vm271, 1, 0
        %v324 = vsel %vm272, 1, 0
        %v325 = vsel %vm273, 1, 0
        %vm326 = vcmp.eq.s32.totalorder %v322, 1
        %vm327 = vcmp.eq.s32.totalorder %v323, 1
        %vm328 = vcmp.eq.s32.totalorder %v324, 1
        %vm329 = vcmp.eq.s32.totalorder %v325, 1
        %vm330 = vmand %vm290, %vm326
        %vm331 = vmand %vm291, %vm327
        %vm332 = vmand %vm292, %vm328
        %vm333 = vmand %vm293, %vm329
        %vm334 = vmand %vm294, %vm326
        %vm335 = vmand %vm295, %vm327
        %vm336 = vmand %vm296, %vm328
        %vm337 = vmand %vm297, %vm329
        %vm338 = vmand %vm298, %vm326
        %vm339 = vmand %vm299, %vm327
        %vm340 = vmand %vm300, %vm328
        %vm341 = vmand %vm301, %vm329
        %vm342 = vmand %vm302, %vm326
        %vm343 = vmand %vm303, %vm327
        %vm344 = vmand %vm304, %vm328
        %vm345 = vmand %vm305, %vm329
        %vm346 = vmand %vm306, %vm326
        %vm347 = vmand %vm307, %vm327
        %vm348 = vmand %vm308, %vm328
        %vm349 = vmand %vm309, %vm329
        %vm350 = vmand %vm310, %vm326
        %vm351 = vmand %vm311, %vm327
        %vm352 = vmand %vm312, %vm328
        %vm353 = vmand %vm313, %vm329
        %vm354 = vmand %vm314, %vm326
        %vm355 = vmand %vm315, %vm327
        %vm356 = vmand %vm316, %vm328
        %vm357 = vmand %vm317, %vm329
        %vm358 = vmand %vm318, %vm326
        %vm359 = vmand %vm319, %vm327
        %vm360 = vmand %vm320, %vm328
        %vm361 = vmand %vm321, %vm329
        %v362 = vsel %vm330, 1, 0
        %v363 = vsel %vm331, 1, 0
        %v364 = vsel %vm332, 1, 0
        %v365 = vsel %vm333, 1, 0
        %v366 = vsel %vm334, 1, 0
        %v367 = vsel %vm335, 1, 0
        %v368 = vsel %vm336, 1, 0
        %v369 = vsel %vm337, 1, 0
        %v370 = vsel %vm338, 1, 0
        %v371 = vsel %vm339, 1, 0
        %v372 = vsel %vm340, 1, 0
        %v373 = vsel %vm341, 1, 0
        %v374 = vsel %vm342, 1, 0
        %v375 = vsel %vm343, 1, 0
        %v376 = vsel %vm344, 1, 0
        %v377 = vsel %vm345, 1, 0
        %v378 = vsel %vm346, 1, 0
        %v379 = vsel %vm347, 1, 0
        %v380 = vsel %vm348, 1, 0
        %v381 = vsel %vm349, 1, 0
        %v382 = vsel %vm350, 1, 0
        %v383 = vsel %vm351, 1, 0
        %v384 = vsel %vm352, 1, 0
        %v385 = vsel %vm353, 1, 0
        %v386 = vsel %vm354, 1, 0
        %v387 = vsel %vm355, 1, 0
        %v388 = vsel %vm356, 1, 0
        %v389 = vsel %vm357, 1, 0
        %v390 = vsel %vm358, 1, 0
        %v391 = vsel %vm359, 1, 0
        %v392 = vsel %vm360, 1, 0
        %v393 = vsel %vm361, 1, 0
        %v394 = vcvt.s32.f32 %v362
        %v395 = vcvt.s32.f32 %v363
        %v396 = vcvt.s32.f32 %v364
        %v397 = vcvt.s32.f32 %v365
        %v398 = vcvt.s32.f32 %v366
        %v399 = vcvt.s32.f32 %v367
        %v400 = vcvt.s32.f32 %v368
        %v401 = vcvt.s32.f32 %v369
        %v402 = vcvt.s32.f32 %v370
        %v403 = vcvt.s32.f32 %v371
        %v404 = vcvt.s32.f32 %v372
        %v405 = vcvt.s32.f32 %v373
        %v406 = vcvt.s32.f32 %v374
        %v407 = vcvt.s32.f32 %v375
        %v408 = vcvt.s32.f32 %v376
        %v409 = vcvt.s32.f32 %v377
        %v410 = vcvt.s32.f32 %v378
        %v411 = vcvt.s32.f32 %v379
        %v412 = vcvt.s32.f32 %v380
        %v413 = vcvt.s32.f32 %v381
        %v414 = vcvt.s32.f32 %v382
        %v415 = vcvt.s32.f32 %v383
        %v416 = vcvt.s32.f32 %v384
        %v417 = vcvt.s32.f32 %v385
        %v418 = vcvt.s32.f32 %v386
        %v419 = vcvt.s32.f32 %v387
        %v420 = vcvt.s32.f32 %v388
        %v421 = vcvt.s32.f32 %v389
        %v422 = vcvt.s32.f32 %v390
        %v423 = vcvt.s32.f32 %v391
        %v424 = vcvt.s32.f32 %v392
        %v425 = vcvt.s32.f32 %v393
        %v426 = vadd.s32 %v243, 64
        %v427 = vadd.s32 %v243, 72
        %v428 = vadd.s32 %v243, 80
        %v429 = vadd.s32 %v243, 88
        %v430 = vadd.s32 %v243, 96
        %v431 = vadd.s32 %v243, 104
        %v432 = vadd.s32 %v243, 112
        %v433 = vadd.s32 %v243, 120
        %v434 = vadd.s32 %v243, 128
        %v435 = vadd.s32 %v243, 136
        %v436 = vadd.s32 %v243, 144
        %v437 = vadd.s32 %v243, 152
        %v438 = vadd.s32 %v243, 160
        %v439 = vadd.s32 %v243, 168
        %v440 = vadd.s32 %v243, 176
        %v441 = vadd.s32 %v243, 184
        %v442 = vadd.s32 %v243, 192
        %v443 = vadd.s32 %v243, 200
        %v444 = vadd.s32 %v243, 208
        %v445 = vadd.s32 %v243, 216
        %v446 = vadd.s32 %v243, 224
        %v447 = vadd.s32 %v243, 232
        %v448 = vadd.s32 %v243, 240
        %v449 = vadd.s32 %v243, 248
        %v450 = vadd.s32 %v243, 256
        %v451 = vadd.s32 %v243, 264
        %v452 = vadd.s32 %v243, 272
        %v453 = vadd.s32 %v243, 280
        %v454 = vadd.s32 %v243, 288
        %v455 = vadd.s32 %v243, 296
        %v456 = vadd.s32 %v243, 304
        %v457 = vadd.s32 %v243, 312
        %v458 = vadd.s32 %v243, 320
        %v459 = vadd.s32 %v243, 328
        %v460 = vadd.s32 %v243, 336
        %v461 = vadd.s32 %v243, 344
        %v462 = vadd.s32 %v243, 352
        %v463 = vadd.s32 %v243, 360
        %v464 = vadd.s32 %v243, 368
        %v465 = vadd.s32 %v243, 376
        %v466 = vadd.s32 %v243, 384
        %v467 = vadd.s32 %v243, 392
        %v468 = vadd.s32 %v243, 400
        %v469 = vadd.s32 %v243, 408
        %v470 = vadd.s32 %v243, 416
        %v471 = vadd.s32 %v243, 424
        %v472 = vadd.s32 %v243, 432
        %v473 = vadd.s32 %v243, 440
        %v474 = vadd.s32 %v243, 448
        %v475 = vadd.s32 %v243, 456
        %v476 = vadd.s32 %v243, 464
        %v477 = vadd.s32 %v243, 472
        %v478 = vadd.s32 %v243, 480
        %v479 = vadd.s32 %v243, 488
        %v480 = vadd.s32 %v243, 496
        %v481 = vadd.s32 %v243, 504
        %v482 = vadd.s32 %v243, %v265
        %v483 = vadd.s32 %v244, %v265
        %v484 = vadd.s32 %v245, %v265
        %v485 = vadd.s32 %v246, %v265
        %v486 = vadd.s32 %v247, %v265
        %v487 = vadd.s32 %v248, %v265
        %v488 = vadd.s32 %v249, %v265
        %v489 = vadd.s32 %v250, %v265
        %v490 = vadd.s32 %v426, %v265
        %v491 = vadd.s32 %v427, %v265
        %v492 = vadd.s32 %v428, %v265
        %v493 = vadd.s32 %v429, %v265
        %v494 = vadd.s32 %v430, %v265
        %v495 = vadd.s32 %v431, %v265
        %v496 = vadd.s32 %v432, %v265
        %v497 = vadd.s32 %v433, %v265
        %v498 = vadd.s32 %v434, %v265
        %v499 = vadd.s32 %v435, %v265
        %v500 = vadd.s32 %v436, %v265
        %v501 = vadd.s32 %v437, %v265
        %v502 = vadd.s32 %v438, %v265
        %v503 = vadd.s32 %v439, %v265
        %v504 = vadd.s32 %v440, %v265
        %v505 = vadd.s32 %v441, %v265
        %v506 = vadd.s32 %v442, %v265
        %v507 = vadd.s32 %v443, %v265
        %v508 = vadd.s32 %v444, %v265
        %v509 = vadd.s32 %v445, %v265
        %v510 = vadd.s32 %v446, %v265
        %v511 = vadd.s32 %v447, %v265
        %v512 = vadd.s32 %v448, %v265
        %v513 = vadd.s32 %v449, %v265
        %v514 = vadd.s32 %v450, %v265
        %v515 = vadd.s32 %v451, %v265
        %v516 = vadd.s32 %v452, %v265
        %v517 = vadd.s32 %v453, %v265
        %v518 = vadd.s32 %v454, %v265
        %v519 = vadd.s32 %v455, %v265
        %v520 = vadd.s32 %v456, %v265
        %v521 = vadd.s32 %v457, %v265
        %v522 = vadd.s32 %v458, %v265
        %v523 = vadd.s32 %v459, %v265
        %v524 = vadd.s32 %v460, %v265
        %v525 = vadd.s32 %v461, %v265
        %v526 = vadd.s32 %v462, %v265
        %v527 = vadd.s32 %v463, %v265
        %v528 = vadd.s32 %v464, %v265
        %v529 = vadd.s32 %v465, %v265
        %v530 = vadd.s32 %v466, %v265
        %v531 = vadd.s32 %v467, %v265
        %v532 = vadd.s32 %v468, %v265
        %v533 = vadd.s32 %v469, %v265
        %v534 = vadd.s32 %v470, %v265
        %v535 = vadd.s32 %v471, %v265
        %v536 = vadd.s32 %v472, %v265
        %v537 = vadd.s32 %v473, %v265
        %v538 = vadd.s32 %v474, %v265
        %v539 = vadd.s32 %v475, %v265
        %v540 = vadd.s32 %v476, %v265
        %v541 = vadd.s32 %v477, %v265
        %v542 = vadd.s32 %v478, %v265
        %v543 = vadd.s32 %v479, %v265
        %v544 = vadd.s32 %v480, %v265
        %v545 = vadd.s32 %v481, %v265
        %vm546 = vcmp.lt.s32.totalorder %v482, 1000
        %vm547 = vcmp.lt.s32.totalorder %v483, 1000
        %vm548 = vcmp.lt.s32.totalorder %v484, 1000
        %vm549 = vcmp.lt.s32.totalorder %v485, 1000
        %vm550 = vcmp.lt.s32.totalorder %v486, 1000
        %vm551 = vcmp.lt.s32.totalorder %v487, 1000
        %vm552 = vcmp.lt.s32.totalorder %v488, 1000
        %vm553 = vcmp.lt.s32.totalorder %v489, 1000
        %vm554 = vcmp.lt.s32.totalorder %v490, 1000
        %vm555 = vcmp.lt.s32.totalorder %v491, 1000
        %vm556 = vcmp.lt.s32.totalorder %v492, 1000
        %vm557 = vcmp.lt.s32.totalorder %v493, 1000
        %vm558 = vcmp.lt.s32.totalorder %v494, 1000
        %vm559 = vcmp.lt.s32.totalorder %v495, 1000
        %vm560 = vcmp.lt.s32.totalorder %v496, 1000
        %vm561 = vcmp.lt.s32.totalorder %v497, 1000
        %vm562 = vcmp.lt.s32.totalorder %v498, 1000
        %vm563 = vcmp.lt.s32.totalorder %v499, 1000
        %vm564 = vcmp.lt.s32.totalorder %v500, 1000
        %vm565 = vcmp.lt.s32.totalorder %v501, 1000
        %vm566 = vcmp.lt.s32.totalorder %v502, 1000
        %vm567 = vcmp.lt.s32.totalorder %v503, 1000
        %vm568 = vcmp.lt.s32.totalorder %v504, 1000
        %vm569 = vcmp.lt.s32.totalorder %v505, 1000
        %vm570 = vcmp.lt.s32.totalorder %v506, 1000
        %vm571 = vcmp.lt.s32.totalorder %v507, 1000
        %vm572 = vcmp.lt.s32.totalorder %v508, 1000
        %vm573 = vcmp.lt.s32.totalorder %v509, 1000
        %vm574 = vcmp.lt.s32.totalorder %v510, 1000
        %vm575 = vcmp.lt.s32.totalorder %v511, 1000
        %vm576 = vcmp.lt.s32.totalorder %v512, 1000
        %vm577 = vcmp.lt.s32.totalorder %v513, 1000
        %vm578 = vcmp.lt.s32.totalorder %v514, 1000
        %vm579 = vcmp.lt.s32.totalorder %v515, 1000
        %vm580 = vcmp.lt.s32.totalorder %v516, 1000
        %vm581 = vcmp.lt.s32.totalorder %v517, 1000
        %vm582 = vcmp.lt.s32.totalorder %v518, 1000
        %vm583 = vcmp.lt.s32.totalorder %v519, 1000
        %vm584 = vcmp.lt.s32.totalorder %v520, 1000
        %vm585 = vcmp.lt.s32.totalorder %v521, 1000
        %vm586 = vcmp.lt.s32.totalorder %v522, 1000
        %vm587 = vcmp.lt.s32.totalorder %v523, 1000
        %vm588 = vcmp.lt.s32.totalorder %v524, 1000
        %vm589 = vcmp.lt.s32.totalorder %v525, 1000
        %vm590 = vcmp.lt.s32.totalorder %v526, 1000
        %vm591 = vcmp.lt.s32.totalorder %v527, 1000
        %vm592 = vcmp.lt.s32.totalorder %v528, 1000
        %vm593 = vcmp.lt.s32.totalorder %v529, 1000
        %vm594 = vcmp.lt.s32.totalorder %v530, 1000
        %vm595 = vcmp.lt.s32.totalorder %v531, 1000
        %vm596 = vcmp.lt.s32.totalorder %v532, 1000
        %vm597 = vcmp.lt.s32.totalorder %v533, 1000
        %vm598 = vcmp.lt.s32.totalorder %v534, 1000
        %vm599 = vcmp.lt.s32.totalorder %v535, 1000
        %vm600 = vcmp.lt.s32.totalorder %v536, 1000
        %vm601 = vcmp.lt.s32.totalorder %v537, 1000
        %vm602 = vcmp.lt.s32.totalorder %v538, 1000
        %vm603 = vcmp.lt.s32.totalorder %v539, 1000
        %vm604 = vcmp.lt.s32.totalorder %v540, 1000
        %vm605 = vcmp.lt.s32.totalorder %v541, 1000
        %vm606 = vcmp.lt.s32.totalorder %v542, 1000
        %vm607 = vcmp.lt.s32.totalorder %v543, 1000
        %vm608 = vcmp.lt.s32.totalorder %v544, 1000
        %vm609 = vcmp.lt.s32.totalorder %v545, 1000
        %v610 = vld [vmem:[%s190] sm:$0xff]
        %v611 = vld [vmem:[%s190 + $0x8] sm:$0xff]
        %v612 = vld [vmem:[%s190 + $0x10] sm:$0xff]
        %v613 = vld [vmem:[%s190 + $0x18] sm:$0xff]
        %v614 = vld [vmem:[%s190 + $0x20] sm:$0xff]
        %v615 = vld [vmem:[%s190 + $0x28] sm:$0xff]
        %v616 = vld [vmem:[%s190 + $0x30] sm:$0xff]
        %v617 = vld [vmem:[%s190 + $0x38] sm:$0xff]
        %v618 = vld [vmem:[%s190 + $0x40] sm:$0xff]
        %v619 = vld [vmem:[%s190 + $0x48] sm:$0xff]
        %v620 = vld [vmem:[%s190 + $0x50] sm:$0xff]
        %v621 = vld [vmem:[%s190 + $0x58] sm:$0xff]
        %v622 = vld [vmem:[%s190 + $0x60] sm:$0xff]
        %v623 = vld [vmem:[%s190 + $0x68] sm:$0xff]
        %v624 = vld [vmem:[%s190 + $0x70] sm:$0xff]
        %v625 = vld [vmem:[%s190 + $0x78] sm:$0xff]
        %v626 = vld [vmem:[%s190 + $0x80] sm:$0xff]
        %v627 = vld [vmem:[%s190 + $0x88] sm:$0xff]
        %v628 = vld [vmem:[%s190 + $0x90] sm:$0xff]
        %v629 = vld [vmem:[%s190 + $0x98] sm:$0xff]
        %v630 = vld [vmem:[%s190 + $0xa0] sm:$0xff]
        %v631 = vld [vmem:[%s190 + $0xa8] sm:$0xff]
        %v632 = vld [vmem:[%s190 + $0xb0] sm:$0xff]
        %v633 = vld [vmem:[%s190 + $0xb8] sm:$0xff]
        %v634 = vld [vmem:[%s190 + $0xc0] sm:$0xff]
        %v635 = vld [vmem:[%s190 + $0xc8] sm:$0xff]
        %v636 = vld [vmem:[%s190 + $0xd0] sm:$0xff]
        %v637 = vld [vmem:[%s190 + $0xd8] sm:$0xff]
        %v638 = vld [vmem:[%s190 + $0xe0] sm:$0xff]
        %v639 = vld [vmem:[%s190 + $0xe8] sm:$0xff]
        %v640 = vld [vmem:[%s190 + $0xf0] sm:$0xff]
        %v641 = vld [vmem:[%s190 + $0xf8] sm:$0xff]
        %v642 = vld [vmem:[%s190 + $0x100] sm:$0xff]
        %v643 = vld [vmem:[%s190 + $0x108] sm:$0xff]
        %v644 = vld [vmem:[%s190 + $0x110] sm:$0xff]
        %v645 = vld [vmem:[%s190 + $0x118] sm:$0xff]
        %v646 = vld [vmem:[%s190 + $0x120] sm:$0xff]
        %v647 = vld [vmem:[%s190 + $0x128] sm:$0xff]
        %v648 = vld [vmem:[%s190 + $0x130] sm:$0xff]
        %v649 = vld [vmem:[%s190 + $0x138] sm:$0xff]
        %v650 = vld [vmem:[%s190 + $0x140] sm:$0xff]
        %v651 = vld [vmem:[%s190 + $0x148] sm:$0xff]
        %v652 = vld [vmem:[%s190 + $0x150] sm:$0xff]
        %v653 = vld [vmem:[%s190 + $0x158] sm:$0xff]
        %v654 = vld [vmem:[%s190 + $0x160] sm:$0xff]
        %v655 = vld [vmem:[%s190 + $0x168] sm:$0xff]
        %v656 = vld [vmem:[%s190 + $0x170] sm:$0xff]
        %v657 = vld [vmem:[%s190 + $0x178] sm:$0xff]
        %v658 = vld [vmem:[%s190 + $0x180] sm:$0xff]
        %v659 = vld [vmem:[%s190 + $0x188] sm:$0xff]
        %v660 = vld [vmem:[%s190 + $0x190] sm:$0xff]
        %v661 = vld [vmem:[%s190 + $0x198] sm:$0xff]
        %v662 = vld [vmem:[%s190 + $0x1a0] sm:$0xff]
        %v663 = vld [vmem:[%s190 + $0x1a8] sm:$0xff]
        %v664 = vld [vmem:[%s190 + $0x1b0] sm:$0xff]
        %v665 = vld [vmem:[%s190 + $0x1b8] sm:$0xff]
        %v666 = vld [vmem:[%s190 + $0x1c0] sm:$0xff]
        %v667 = vld [vmem:[%s190 + $0x1c8] sm:$0xff]
        %v668 = vld [vmem:[%s190 + $0x1d0] sm:$0xff]
        %v669 = vld [vmem:[%s190 + $0x1d8] sm:$0xff]
        %v670 = vld [vmem:[%s190 + $0x1e0] sm:$0xff]
        %v671 = vld [vmem:[%s190 + $0x1e8] sm:$0xff]
        %v672 = vld [vmem:[%s190 + $0x1f0] sm:$0xff]
        %v673 = vld [vmem:[%s190 + $0x1f8] sm:$0xff]
        %v674 = vsel %vm546, 1, 0
        %v675 = vsel %vm547, 1, 0
        %v676 = vsel %vm548, 1, 0
        %v677 = vsel %vm549, 1, 0
        %v678 = vsel %vm550, 1, 0
        %v679 = vsel %vm551, 1, 0
        %v680 = vsel %vm552, 1, 0
        %v681 = vsel %vm553, 1, 0
        %v682 = vsel %vm554, 1, 0
        %v683 = vsel %vm555, 1, 0
        %v684 = vsel %vm556, 1, 0
        %v685 = vsel %vm557, 1, 0
        %v686 = vsel %vm558, 1, 0
        %v687 = vsel %vm559, 1, 0
        %v688 = vsel %vm560, 1, 0
        %v689 = vsel %vm561, 1, 0
        %v690 = vsel %vm562, 1, 0
        %v691 = vsel %vm563, 1, 0
        %v692 = vsel %vm564, 1, 0
        %v693 = vsel %vm565, 1, 0
        %v694 = vsel %vm566, 1, 0
        %v695 = vsel %vm567, 1, 0
        %v696 = vsel %vm568, 1, 0
        %v697 = vsel %vm569, 1, 0
        %v698 = vsel %vm570, 1, 0
        %v699 = vsel %vm571, 1, 0
        %v700 = vsel %vm572, 1, 0
        %v701 = vsel %vm573, 1, 0
        %v702 = vsel %vm574, 1, 0
        %v703 = vsel %vm575, 1, 0
        %v704 = vsel %vm576, 1, 0
        %v705 = vsel %vm577, 1, 0
        %v706 = vsel %vm578, 1, 0
        %v707 = vsel %vm579, 1, 0
        %v708 = vsel %vm580, 1, 0
        %v709 = vsel %vm581, 1, 0
        %v710 = vsel %vm582, 1, 0
        %v711 = vsel %vm583, 1, 0
        %v712 = vsel %vm584, 1, 0
        %v713 = vsel %vm585, 1, 0
        %v714 = vsel %vm586, 1, 0
        %v715 = vsel %vm587, 1, 0
        %v716 = vsel %vm588, 1, 0
        %v717 = vsel %vm589, 1, 0
        %v718 = vsel %vm590, 1, 0
        %v719 = vsel %vm591, 1, 0
        %v720 = vsel %vm592, 1, 0
        %v721 = vsel %vm593, 1, 0
        %v722 = vsel %vm594, 1, 0
        %v723 = vsel %vm595, 1, 0
        %v724 = vsel %vm596, 1, 0
        %v725 = vsel %vm597, 1, 0
        %v726 = vsel %vm598, 1, 0
        %v727 = vsel %vm599, 1, 0
        %v728 = vsel %vm600, 1, 0
        %v729 = vsel %vm601, 1, 0
        %v730 = vsel %vm602, 1, 0
        %v731 = vsel %vm603, 1, 0
        %v732 = vsel %vm604, 1, 0
        %v733 = vsel %vm605, 1, 0
        %v734 = vsel %vm606, 1, 0
        %v735 = vsel %vm607, 1, 0
        %v736 = vsel %vm608, 1, 0
        %v737 = vsel %vm609, 1, 0
        %vm738 = vcmp.eq.s32.totalorder %v674, 1
        %vm739 = vcmp.eq.s32.totalorder %v675, 1
        %vm740 = vcmp.eq.s32.totalorder %v676, 1
        %vm741 = vcmp.eq.s32.totalorder %v677, 1
        %vm742 = vcmp.eq.s32.totalorder %v678, 1
        %vm743 = vcmp.eq.s32.totalorder %v679, 1
        %vm744 = vcmp.eq.s32.totalorder %v680, 1
        %vm745 = vcmp.eq.s32.totalorder %v681, 1
        %vm746 = vcmp.eq.s32.totalorder %v682, 1
        %vm747 = vcmp.eq.s32.totalorder %v683, 1
        %vm748 = vcmp.eq.s32.totalorder %v684, 1
        %vm749 = vcmp.eq.s32.totalorder %v685, 1
        %vm750 = vcmp.eq.s32.totalorder %v686, 1
        %vm751 = vcmp.eq.s32.totalorder %v687, 1
        %vm752 = vcmp.eq.s32.totalorder %v688, 1
        %vm753 = vcmp.eq.s32.totalorder %v689, 1
        %vm754 = vcmp.eq.s32.totalorder %v690, 1
        %vm755 = vcmp.eq.s32.totalorder %v691, 1
        %vm756 = vcmp.eq.s32.totalorder %v692, 1
        %vm757 = vcmp.eq.s32.totalorder %v693, 1
        %vm758 = vcmp.eq.s32.totalorder %v694, 1
        %vm759 = vcmp.eq.s32.totalorder %v695, 1
        %vm760 = vcmp.eq.s32.totalorder %v696, 1
        %vm761 = vcmp.eq.s32.totalorder %v697, 1
        %vm762 = vcmp.eq.s32.totalorder %v698, 1
        %vm763 = vcmp.eq.s32.totalorder %v699, 1
        %vm764 = vcmp.eq.s32.totalorder %v700, 1
        %vm765 = vcmp.eq.s32.totalorder %v701, 1
        %vm766 = vcmp.eq.s32.totalorder %v702, 1
        %vm767 = vcmp.eq.s32.totalorder %v703, 1
        %vm768 = vcmp.eq.s32.totalorder %v704, 1
        %vm769 = vcmp.eq.s32.totalorder %v705, 1
        %vm770 = vcmp.eq.s32.totalorder %v706, 1
        %vm771 = vcmp.eq.s32.totalorder %v707, 1
        %vm772 = vcmp.eq.s32.totalorder %v708, 1
        %vm773 = vcmp.eq.s32.totalorder %v709, 1
        %vm774 = vcmp.eq.s32.totalorder %v710, 1
        %vm775 = vcmp.eq.s32.totalorder %v711, 1
        %vm776 = vcmp.eq.s32.totalorder %v712, 1
        %vm777 = vcmp.eq.s32.totalorder %v713, 1
        %vm778 = vcmp.eq.s32.totalorder %v714, 1
        %vm779 = vcmp.eq.s32.totalorder %v715, 1
        %vm780 = vcmp.eq.s32.totalorder %v716, 1
        %vm781 = vcmp.eq.s32.totalorder %v717, 1
        %vm782 = vcmp.eq.s32.totalorder %v718, 1
        %vm783 = vcmp.eq.s32.totalorder %v719, 1
        %vm784 = vcmp.eq.s32.totalorder %v720, 1
        %vm785 = vcmp.eq.s32.totalorder %v721, 1
        %vm786 = vcmp.eq.s32.totalorder %v722, 1
        %vm787 = vcmp.eq.s32.totalorder %v723, 1
        %vm788 = vcmp.eq.s32.totalorder %v724, 1
        %vm789 = vcmp.eq.s32.totalorder %v725, 1
        %vm790 = vcmp.eq.s32.totalorder %v726, 1
        %vm791 = vcmp.eq.s32.totalorder %v727, 1
        %vm792 = vcmp.eq.s32.totalorder %v728, 1
        %vm793 = vcmp.eq.s32.totalorder %v729, 1
        %vm794 = vcmp.eq.s32.totalorder %v730, 1
        %vm795 = vcmp.eq.s32.totalorder %v731, 1
        %vm796 = vcmp.eq.s32.totalorder %v732, 1
        %vm797 = vcmp.eq.s32.totalorder %v733, 1
        %vm798 = vcmp.eq.s32.totalorder %v734, 1
        %vm799 = vcmp.eq.s32.totalorder %v735, 1
        %vm800 = vcmp.eq.s32.totalorder %v736, 1
        %vm801 = vcmp.eq.s32.totalorder %v737, 1
        %v802 = vsel %vm738, %v610, 0.0
        %v803 = vsel %vm739, %v611, 0.0
        %v804 = vsel %vm740, %v612, 0.0
        %v805 = vsel %vm741, %v613, 0.0
        %v806 = vsel %vm742, %v614, 0.0
        %v807 = vsel %vm743, %v615, 0.0
        %v808 = vsel %vm744, %v616, 0.0
        %v809 = vsel %vm745, %v617, 0.0
        %v810 = vsel %vm746, %v618, 0.0
        %v811 = vsel %vm747, %v619, 0.0
        %v812 = vsel %vm748, %v620, 0.0
        %v813 = vsel %vm749, %v621, 0.0
        %v814 = vsel %vm750, %v622, 0.0
        %v815 = vsel %vm751, %v623, 0.0
        %v816 = vsel %vm752, %v624, 0.0
        %v817 = vsel %vm753, %v625, 0.0
        %v818 = vsel %vm754, %v626, 0.0
        %v819 = vsel %vm755, %v627, 0.0
        %v820 = vsel %vm756, %v628, 0.0
        %v821 = vsel %vm757, %v629, 0.0
        %v822 = vsel %vm758, %v630, 0.0
        %v823 = vsel %vm759, %v631, 0.0
        %v824 = vsel %vm760, %v632, 0.0
        %v825 = vsel %vm761, %v633, 0.0
        %v826 = vsel %vm762, %v634, 0.0
        %v827 = vsel %vm763, %v635, 0.0
        %v828 = vsel %vm764, %v636, 0.0
        %v829 = vsel %vm765, %v637, 0.0
        %v830 = vsel %vm766, %v638, 0.0
        %v831 = vsel %vm767, %v639, 0.0
        %v832 = vsel %vm768, %v640, 0.0
        %v833 = vsel %vm769, %v641, 0.0
        %v834 = vsel %vm770, %v642, 0.0
        %v835 = vsel %vm771, %v643, 0.0
        %v836 = vsel %vm772, %v644, 0.0
        %v837 = vsel %vm773, %v645, 0.0
        %v838 = vsel %vm774, %v646, 0.0
        %v839 = vsel %vm775, %v647, 0.0
        %v840 = vsel %vm776, %v648, 0.0
        %v841 = vsel %vm777, %v649, 0.0
        %v842 = vsel %vm778, %v650, 0.0
        %v843 = vsel %vm779, %v651, 0.0
        %v844 = vsel %vm780, %v652, 0.0
        %v845 = vsel %vm781, %v653, 0.0
        %v846 = vsel %vm782, %v654, 0.0
        %v847 = vsel %vm783, %v655, 0.0
        %v848 = vsel %vm784, %v656, 0.0
        %v849 = vsel %vm785, %v657, 0.0
        %v850 = vsel %vm786, %v658, 0.0
        %v851 = vsel %vm787, %v659, 0.0
        %v852 = vsel %vm788, %v660, 0.0
        %v853 = vsel %vm789, %v661, 0.0
        %v854 = vsel %vm790, %v662, 0.0
        %v855 = vsel %vm791, %v663, 0.0
        %v856 = vsel %vm792, %v664, 0.0
        %v857 = vsel %vm793, %v665, 0.0
        %v858 = vsel %vm794, %v666, 0.0
        %v859 = vsel %vm795, %v667, 0.0
        %v860 = vsel %vm796, %v668, 0.0
        %v861 = vsel %vm797, %v669, 0.0
        %v862 = vsel %vm798, %v670, 0.0
        %v863 = vsel %vm799, %v671, 0.0
        %v864 = vsel %vm800, %v672, 0.0
        %v865 = vsel %vm801, %v673, 0.0
        %v866 = vld [vmem:[#allocation8] sm:$0xff]
        %v867 = vld [vmem:[#allocation8 + $0x8] sm:$0xff]
        %v868 = vld [vmem:[#allocation8 + $0x10] sm:$0xff]
        %v869 = vld [vmem:[#allocation8 + $0x18] sm:$0xff]
        %v870 = vld [vmem:[#allocation8 + $0x20] sm:$0xff]
        %v871 = vld [vmem:[#allocation8 + $0x28] sm:$0xff]
        %v872 = vld [vmem:[#allocation8 + $0x30] sm:$0xff]
        %v873 = vld [vmem:[#allocation8 + $0x38] sm:$0xff]
        %v874 = vpack.c.bf16 %v398, %v394
        %v875 = vpack.c.bf16 %v399, %v395
        %v876 = vpack.c.bf16 %v400, %v396
        %v877 = vpack.c.bf16 %v401, %v397
        %v878 = vpack.c.bf16 %v406, %v402
        %v879 = vpack.c.bf16 %v407, %v403
        %v880 = vpack.c.bf16 %v408, %v404
        %v881 = vpack.c.bf16 %v409, %v405
        %v882 = vpack.c.bf16 %v414, %v410
        %v883 = vpack.c.bf16 %v415, %v411
        %v884 = vpack.c.bf16 %v416, %v412
        %v885 = vpack.c.bf16 %v417, %v413
        %v886 = vpack.c.bf16 %v422, %v418
        %v887 = vpack.c.bf16 %v423, %v419
        %v888 = vpack.c.bf16 %v424, %v420
        %v889 = vpack.c.bf16 %v425, %v421
        %v890 = vpack.c.bf16 %v803, %v802
        %v891 = vpack.c.bf16 %v805, %v804
        %v892 = vpack.c.bf16 %v807, %v806
        %v893 = vpack.c.bf16 %v809, %v808
        %v894 = vpack.c.bf16 %v811, %v810
        %v895 = vpack.c.bf16 %v813, %v812
        %v896 = vpack.c.bf16 %v815, %v814
        %v897 = vpack.c.bf16 %v817, %v816
        %v898 = vpack.c.bf16 %v819, %v818
        %v899 = vpack.c.bf16 %v821, %v820
        %v900 = vpack.c.bf16 %v823, %v822
        %v901 = vpack.c.bf16 %v825, %v824
        %v902 = vpack.c.bf16 %v827, %v826
        %v903 = vpack.c.bf16 %v829, %v828
        %v904 = vpack.c.bf16 %v831, %v830
        %v905 = vpack.c.bf16 %v833, %v832
        %v906 = vpack.c.bf16 %v835, %v834
        %v907 = vpack.c.bf16 %v837, %v836
        %v908 = vpack.c.bf16 %v839, %v838
        %v909 = vpack.c.bf16 %v841, %v840
        %v910 = vpack.c.bf16 %v843, %v842
        %v911 = vpack.c.bf16 %v845, %v844
        %v912 = vpack.c.bf16 %v847, %v846
        %v913 = vpack.c.bf16 %v849, %v848
        %v914 = vpack.c.bf16 %v851, %v850
        %v915 = vpack.c.bf16 %v853, %v852
        %v916 = vpack.c.bf16 %v855, %v854
        %v917 = vpack.c.bf16 %v857, %v856
        %v918 = vpack.c.bf16 %v859, %v858
        %v919 = vpack.c.bf16 %v861, %v860
        %v920 = vpack.c.bf16 %v863, %v862
        %v921 = vpack.c.bf16 %v865, %v864
        %922 = vmatprep.subr.bf16.mxu0 0
        %923 = vmatpush1.bf16.msra.mxu0 %v890
        %924 = vmatprep.subr.bf16.mxu0 0
        %925 = vmatpush1.bf16.msra.mxu0 %v891
        %926 = vmatprep.subr.bf16.mxu0 0
        %927 = vmatpush1.bf16.msra.mxu0 %v892
        %928 = vmatprep.subr.bf16.mxu0 0
        %929 = vmatpush1.bf16.msra.mxu0 %v893
        %930 = vmatprep.subr.bf16.mxu0 0
        %931 = vmatpush1.bf16.msra.mxu0 %v894
        %932 = vmatprep.subr.bf16.mxu0 0
        %933 = vmatpush1.bf16.msra.mxu0 %v895
        %934 = vmatprep.subr.bf16.mxu0 0
        %935 = vmatpush1.bf16.msra.mxu0 %v896
        %936 = vmatprep.subr.bf16.mxu0 0
        %937 = vmatpush1.bf16.msra.mxu0 %v897
        %938 = vmatprep.subr.bf16.mxu0 0
        %939 = vmatpush1.bf16.msra.mxu0 %v898
        %940 = vmatprep.subr.bf16.mxu0 0
        %941 = vmatpush1.bf16.msra.mxu0 %v899
        %942 = vmatprep.subr.bf16.mxu0 0
        %943 = vmatpush1.bf16.msra.mxu0 %v900
        %944 = vmatprep.subr.bf16.mxu0 0
        %945 = vmatpush1.bf16.msra.mxu0 %v901
        %946 = vmatprep.subr.bf16.mxu0 0
        %947 = vmatpush1.bf16.msra.mxu0 %v902
        %948 = vmatprep.subr.bf16.mxu0 0
        %949 = vmatpush1.bf16.msra.mxu0 %v903
        %950 = vmatprep.subr.bf16.mxu0 0
        %951 = vmatpush1.bf16.msra.mxu0 %v904
        %952 = vmatprep.subr.bf16.mxu0 0
        %953 = vmatpush1.bf16.msra.mxu0 %v905
        %954 = vmatprep.mubr.bf16.mxu0 %v875
        %955 = vmatmul.mubr.bf16.gmra.mrb[0].mxu0 %v874
        %v956 = vpop.f32.mrb[0].mxu0
        %v957 = vadd.f32 0.0, %v956
        %v958 = vpop.f32.mrb[0].mxu0
        %v959 = vpop.f32.mrb[0].mxu0
        %v960 = vadd.f32 0.0, %v959
        %v961 = vpop.f32.mrb[0].mxu0
        %962 = vmatprep.mubr.bf16.mxu0 %v879
        %963 = vmatmul.mubr.bf16.gmra.mrb[0].mxu0 %v878
        %v964 = vpop.f32.mrb[0].mxu0
        %v965 = vadd.f32 0.0, %v964
        %v966 = vpop.f32.mrb[0].mxu0
        %v967 = vpop.f32.mrb[0].mxu0
        %v968 = vadd.f32 0.0, %v967
        %v969 = vpop.f32.mrb[0].mxu0
        %970 = vmatprep.mubr.bf16.mxu0 %v883
        %971 = vmatmul.mubr.bf16.gmra.mrb[0].mxu0 %v882
        %v972 = vpop.f32.mrb[0].mxu0
        %v973 = vadd.f32 0.0, %v972
        %v974 = vpop.f32.mrb[0].mxu0
        %v975 = vpop.f32.mrb[0].mxu0
        %v976 = vadd.f32 0.0, %v975
        %v977 = vpop.f32.mrb[0].mxu0
        %978 = vmatprep.mubr.bf16.mxu0 %v887
        %979 = vmatmul.mubr.bf16.gmra.mrb[0].mxu0 %v886
        %v980 = vpop.f32.mrb[0].mxu0
        %v981 = vadd.f32 0.0, %v980
        %v982 = vpop.f32.mrb[0].mxu0
        %v983 = vpop.f32.mrb[0].mxu0
        %v984 = vadd.f32 0.0, %v983
        %v985 = vpop.f32.mrb[0].mxu0
        %986 = vdwg.mxu0
        %987 = vmatprep.subr.bf16.mxu0 0
        %988 = vmatpush1.bf16.msra.mxu0 %v906
        %989 = vmatprep.subr.bf16.mxu0 0
        %990 = vmatpush1.bf16.msra.mxu0 %v907
        %991 = vmatprep.subr.bf16.mxu0 0
        %992 = vmatpush1.bf16.msra.mxu0 %v908
        %993 = vmatprep.subr.bf16.mxu0 0
        %994 = vmatpush1.bf16.msra.mxu0 %v909
        %995 = vmatprep.subr.bf16.mxu0 0
        %996 = vmatpush1.bf16.msra.mxu0 %v910
        %997 = vmatprep.subr.bf16.mxu0 0
        %998 = vmatpush1.bf16.msra.mxu0 %v911
        %999 = vmatprep.subr.bf16.mxu0 0
        %1000 = vmatpush1.bf16.msra.mxu0 %v912
        %1001 = vmatprep.subr.bf16.mxu0 0
        %1002 = vmatpush1.bf16.msra.mxu0 %v913
        %1003 = vmatprep.subr.bf16.mxu0 0
        %1004 = vmatpush1.bf16.msra.mxu0 %v914
        %1005 = vmatprep.subr.bf16.mxu0 0
        %1006 = vmatpush1.bf16.msra.mxu0 %v915
        %1007 = vmatprep.subr.bf16.mxu0 0
        %1008 = vmatpush1.bf16.msra.mxu0 %v916
        %1009 = vmatprep.subr.bf16.mxu0 0
        %1010 = vmatpush1.bf16.msra.mxu0 %v917
        %1011 = vmatprep.subr.bf16.mxu0 0
        %1012 = vmatpush1.bf16.msra.mxu0 %v918
        %1013 = vmatprep.subr.bf16.mxu0 0
        %1014 = vmatpush1.bf16.msra.mxu0 %v919
        %1015 = vmatprep.subr.bf16.mxu0 0
        %1016 = vmatpush1.bf16.msra.mxu0 %v920
        %1017 = vmatprep.subr.bf16.mxu0 0
        %1018 = vmatpush1.bf16.msra.mxu0 %v921
        %1019 = vmatprep.mubr.bf16.mxu0 %v877
        %1020 = vmatmul.mubr.bf16.gmra.mrb[0].mxu0 %v876
        %v1021 = vpop.f32.mrb[0].mxu0
        %v1022 = vadd.f32 %v957, %v1021
        %v1023 = vpop.f32.mrb[0].mxu0
        %v1024 = vpop.f32.mrb[0].mxu0
        %v1025 = vadd.f32 %v960, %v1024
        %v1026 = vpop.f32.mrb[0].mxu0
        %1027 = vmatprep.mubr.bf16.mxu0 %v881
        %1028 = vmatmul.mubr.bf16.gmra.mrb[0].mxu0 %v880
        %v1029 = vpop.f32.mrb[0].mxu0
        %v1030 = vadd.f32 %v965, %v1029
        %v1031 = vpop.f32.mrb[0].mxu0
        %v1032 = vpop.f32.mrb[0].mxu0
        %v1033 = vadd.f32 %v968, %v1032
        %v1034 = vpop.f32.mrb[0].mxu0
        %1035 = vmatprep.mubr.bf16.mxu0 %v885
        %1036 = vmatmul.mubr.bf16.gmra.mrb[0].mxu0 %v884
        %v1037 = vpop.f32.mrb[0].mxu0
        %v1038 = vadd.f32 %v973, %v1037
        %v1039 = vpop.f32.mrb[0].mxu0
        %v1040 = vpop.f32.mrb[0].mxu0
        %v1041 = vadd.f32 %v976, %v1040
        %v1042 = vpop.f32.mrb[0].mxu0
        %1043 = vmatprep.mubr.bf16.mxu0 %v889
        %1044 = vmatmul.mubr.bf16.gmra.mrb[0].mxu0 %v888
        %v1045 = vpop.f32.mrb[0].mxu0
        %v1046 = vadd.f32 %v981, %v1045
        %v1047 = vpop.f32.mrb[0].mxu0
        %v1048 = vpop.f32.mrb[0].mxu0
        %v1049 = vadd.f32 %v984, %v1048
        %v1050 = vpop.f32.mrb[0].mxu0
        %1051 = vdwg.mxu0
        %v1052 = vadd.f32 %v866, %v1022
        %v1053 = vadd.f32 %v867, %v1025
        %v1054 = vadd.f32 %v868, %v1030
        %v1055 = vadd.f32 %v869, %v1033
        %v1056 = vadd.f32 %v870, %v1038
        %v1057 = vadd.f32 %v871, %v1041
        %v1058 = vadd.f32 %v872, %v1046
        %v1059 = vadd.f32 %v873, %v1049
        %1060 = vst [vmem:[#allocation8] sm:$0xff] %v1052
        %1061 = vst [vmem:[#allocation8 + $0x8] sm:$0xff] %v1053
        %1062 = vst [vmem:[#allocation8 + $0x10] sm:$0xff] %v1054
        %1063 = vst [vmem:[#allocation8 + $0x18] sm:$0xff] %v1055
        %1064 = vst [vmem:[#allocation8 + $0x20] sm:$0xff] %v1056
        %1065 = vst [vmem:[#allocation8 + $0x28] sm:$0xff] %v1057
        %1066 = vst [vmem:[#allocation8 + $0x30] sm:$0xff] %v1058
        %1067 = vst [vmem:[#allocation8 + $0x38] sm:$0xff] %v1059
        %v1068 = vld [vmem:[#allocation2] sm:$0xff]
        %v1069 = vld [vmem:[#allocation2 + $0x8] sm:$0xff]
        %v1070 = vld [vmem:[#allocation2 + $0x10] sm:$0xff]
        %v1071 = vld [vmem:[#allocation2 + $0x18] sm:$0xff]
        %v1072 = vld [vmem:[#allocation2 + $0x20] sm:$0xff]
        %v1073 = vld [vmem:[#allocation2 + $0x28] sm:$0xff]
        %v1074 = vld [vmem:[#allocation2 + $0x30] sm:$0xff]
        %v1075 = vld [vmem:[#allocation2 + $0x38] sm:$0xff]
        %v1076 = vadd.f32 %v394, %v395
        %v1077 = vadd.f32 %v1076, %v396
        %v1078 = vadd.f32 %v1077, %v397
        %1079 = vadd.xlane.f32.xlu0 %v1078
        %v1080 = vpop.xlane.xlu0 %1079
        %v1081 = vadd.f32 %v398, %v399
        %v1082 = vadd.f32 %v1081, %v400
        %v1083 = vadd.f32 %v1082, %v401
        %1084 = vadd.xlane.f32.xlu0 %v1083
        %v1085 = vpop.xlane.xlu0 %1084
        %v1086 = vadd.f32 %v402, %v403
        %v1087 = vadd.f32 %v1086, %v404
        %v1088 = vadd.f32 %v1087, %v405
        %1089 = vadd.xlane.f32.xlu0 %v1088
        %v1090 = vpop.xlane.xlu0 %1089
        %v1091 = vadd.f32 %v406, %v407
        %v1092 = vadd.f32 %v1091, %v408
        %v1093 = vadd.f32 %v1092, %v409
        %1094 = vadd.xlane.f32.xlu0 %v1093
        %v1095 = vpop.xlane.xlu0 %1094
        %v1096 = vadd.f32 %v410, %v411
        %v1097 = vadd.f32 %v1096, %v412
        %v1098 = vadd.f32 %v1097, %v413
        %1099 = vadd.xlane.f32.xlu0 %v1098
        %v1100 = vpop.xlane.xlu0 %1099
        %v1101 = vadd.f32 %v414, %v415
        %v1102 = vadd.f32 %v1101, %v416
        %v1103 = vadd.f32 %v1102, %v417
        %1104 = vadd.xlane.f32.xlu0 %v1103
        %v1105 = vpop.xlane.xlu0 %1104
        %v1106 = vadd.f32 %v418, %v419
        %v1107 = vadd.f32 %v1106, %v420
        %v1108 = vadd.f32 %v1107, %v421
        %1109 = vadd.xlane.f32.xlu0 %v1108
        %v1110 = vpop.xlane.xlu0 %1109
        %v1111 = vadd.f32 %v422, %v423
        %v1112 = vadd.f32 %v1111, %v424
        %v1113 = vadd.f32 %v1112, %v425
        %1114 = vadd.xlane.f32.xlu0 %v1113
        %v1115 = vpop.xlane.xlu0 %1114
        %v1116 = vadd.f32 %v1068, %v1080
        %v1117 = vadd.f32 %v1069, %v1085
        %v1118 = vadd.f32 %v1070, %v1090
        %v1119 = vadd.f32 %v1071, %v1095
        %v1120 = vadd.f32 %v1072, %v1100
        %v1121 = vadd.f32 %v1073, %v1105
        %v1122 = vadd.f32 %v1074, %v1110
        %v1123 = vadd.f32 %v1075, %v1115
        %vm1124 = vcmask 7168
        %1125 = vst.msk [vmem:[#allocation2] sm:$0xff] %vm1124, %v1116
        %1126 = vst.msk [vmem:[#allocation2 + $0x8] sm:$0xff] %vm1124, %v1117
        %1127 = vst.msk [vmem:[#allocation2 + $0x10] sm:$0xff] %vm1124, %v1118
        %1128 = vst.msk [vmem:[#allocation2 + $0x18] sm:$0xff] %vm1124, %v1119
        %1129 = vst.msk [vmem:[#allocation2 + $0x20] sm:$0xff] %vm1124, %v1120
        %1130 = vst.msk [vmem:[#allocation2 + $0x28] sm:$0xff] %vm1124, %v1121
        %1131 = vst.msk [vmem:[#allocation2 + $0x30] sm:$0xff] %vm1124, %v1122
        %1132 = vst.msk [vmem:[#allocation2 + $0x38] sm:$0xff] %vm1124, %v1123
        %p1133 = scmp.eq.s32.totalorder %s25, 1
        // Predicated region
        $region41: #{tpu_custom_call.1} parent=27 // pred_check
          %p1134 = pneg %p1133
        $region42: #{tpu_custom_call.1} parent=27 // pred_check_branch
          %1136 = sbr.rel (%p1134) target = $region44
        $region43: #{tpu_custom_call.1} parent=27 // pred_region
          %v1137 = vld [vmem:[#allocation8] sm:$0xff]
          %v1138 = vld [vmem:[#allocation8 + $0x8] sm:$0xff]
          %v1139 = vld [vmem:[#allocation8 + $0x10] sm:$0xff]
          %v1140 = vld [vmem:[#allocation8 + $0x18] sm:$0xff]
          %v1141 = vld [vmem:[#allocation8 + $0x20] sm:$0xff]
          %v1142 = vld [vmem:[#allocation8 + $0x28] sm:$0xff]
          %v1143 = vld [vmem:[#allocation8 + $0x30] sm:$0xff]
          %v1144 = vld [vmem:[#allocation8 + $0x38] sm:$0xff]
          %v1145 = vld [vmem:[#allocation2] sm:$0xff]
          %v1146 = vld [vmem:[#allocation2 + $0x8] sm:$0xff]
          %v1147 = vld [vmem:[#allocation2 + $0x10] sm:$0xff]
          %v1148 = vld [vmem:[#allocation2 + $0x18] sm:$0xff]
          %v1149 = vld [vmem:[#allocation2 + $0x20] sm:$0xff]
          %v1150 = vld [vmem:[#allocation2 + $0x28] sm:$0xff]
          %v1151 = vld [vmem:[#allocation2 + $0x30] sm:$0xff]
          %v1152 = vld [vmem:[#allocation2 + $0x38] sm:$0xff]
          %v1153 = vmax.f32 %v1145, 1.0
          %v1154 = vmax.f32 %v1146, 1.0
          %v1155 = vmax.f32 %v1147, 1.0
          %v1156 = vmax.f32 %v1148, 1.0
          %v1157 = vmax.f32 %v1149, 1.0
          %v1158 = vmax.f32 %v1150, 1.0
          %v1159 = vmax.f32 %v1151, 1.0
          %v1160 = vmax.f32 %v1152, 1.0
          %1162 = vset.pattern.permute.xlu0 0
          %1163 = vperm.xlu0 %1162, %v1153
          %v1164 = vpop.permute.xlu0 %1163
          %1167 = vset.pattern.permute.xlu0 0
          %1168 = vperm.xlu0 %1167, %v1154
          %v1169 = vpop.permute.xlu0 %1168
          %1172 = vset.pattern.permute.xlu0 0
          %1173 = vperm.xlu0 %1172, %v1155
          %v1174 = vpop.permute.xlu0 %1173
          %1177 = vset.pattern.permute.xlu0 0
          %1178 = vperm.xlu0 %1177, %v1156
          %v1179 = vpop.permute.xlu0 %1178
          %1182 = vset.pattern.permute.xlu0 0
          %1183 = vperm.xlu0 %1182, %v1157
          %v1184 = vpop.permute.xlu0 %1183
          %1187 = vset.pattern.permute.xlu0 0
          %1188 = vperm.xlu0 %1187, %v1158
          %v1189 = vpop.permute.xlu0 %1188
          %1192 = vset.pattern.permute.xlu0 0
          %1193 = vperm.xlu0 %1192, %v1159
          %v1194 = vpop.permute.xlu0 %1193
          %1197 = vset.pattern.permute.xlu0 0
          %1198 = vperm.xlu0 %1197, %v1160
          %v1199 = vpop.permute.xlu0 %1198
          %v1201 = vrcp.pop %v1164
          %v1202 = vmul.f32 %v1137, %v1201
          %v1203 = vrcp.pop %v1169
          %v1204 = vmul.f32 %v1138, %v1203
          %v1205 = vrcp.pop %v1174
          %v1206 = vmul.f32 %v1139, %v1205
          %v1207 = vrcp.pop %v1179
          %v1208 = vmul.f32 %v1140, %v1207
          %v1209 = vrcp.pop %v1184
          %v1210 = vmul.f32 %v1141, %v1209
          %v1211 = vrcp.pop %v1189
          %v1212 = vmul.f32 %v1142, %v1211
          %v1213 = vrcp.pop %v1194
          %v1214 = vmul.f32 %v1143, %v1213
          %v1215 = vrcp.pop %v1199
          %v1216 = vmul.f32 %v1144, %v1215
          %1217 = vst [vmem:[#allocation8] sm:$0xff] %v1202
          %1218 = vst [vmem:[#allocation8 + $0x8] sm:$0xff] %v1204
          %1219 = vst [vmem:[#allocation8 + $0x10] sm:$0xff] %v1206
          %1220 = vst [vmem:[#allocation8 + $0x18] sm:$0xff] %v1208
          %1221 = vst [vmem:[#allocation8 + $0x20] sm:$0xff] %v1210
          %1222 = vst [vmem:[#allocation8 + $0x28] sm:$0xff] %v1212
          %1223 = vst [vmem:[#allocation8 + $0x30] sm:$0xff] %v1214
          %1224 = vst [vmem:[#allocation8 + $0x38] sm:$0xff] %v1216
        $region44: #{tpu_custom_call.1} parent=27 // pred_fallthru
          _
        // Predicated region
        $region45: #{tpu_custom_call.1} parent=27 // pred_check
          %p1225 = pneg %p102
        $region46: #{tpu_custom_call.1} parent=27 // pred_check_branch
          %1227 = sbr.rel (%p1225) target = $region48
        $region47: #{tpu_custom_call.1} parent=27 // pred_region
          %s1228 = smul.u32 8, %s24
          %s1230 = ssub.s32 1024, 1024
          %1231 = vsyncadd [#allocation5], %s1230
          %s1232 = smul.addr %s1228, 128
          %s1233 = scalar_lea.hbm %s2, %s1232
          %s1234 = sshll.u32 [#allocation8], 4
          %s1235 = int_to_ptr.vmem [resolvable:$true] %s1234
          %1240 = dma.vmem_to_hbm [thread:$0]  %s1235, 1024, %s1233, [#allocation5], 128, 128, 8
        $region48: #{tpu_custom_call.1} parent=27 // pred_fallthru
          _
        // Predicated region
        $region49: #{tpu_custom_call.1} parent=27 // pred_check
          %p1241 = pneg %p102
        $region50: #{tpu_custom_call.1} parent=27 // pred_check_branch
          %1243 = sbr.rel (%p1241) target = $region52
        $region51: #{tpu_custom_call.1} parent=27 // pred_region
          %1244 = dma.done [#allocation5], 1024
        $region52: #{tpu_custom_call.1} parent=27 // pred_fallthru
          _
      $region28: #{tpu_custom_call.1} parent=5 // pred_fallthru
        _
      %p1245 = scmp.le.s32.totalorder 2, %s15
      // Predicated region
      $region53: #{tpu_custom_call.1} parent=5 // pred_check
        %p1246 = pneg %p1245
      $region54: #{tpu_custom_call.1} parent=5 // pred_check_branch
        %1248 = sbr.rel (%p1246) target = $region56
      $region55: #{tpu_custom_call.1} parent=5 // pred_region
        %s1249 = ssub.s32 %s15, 2
      $region56: #{tpu_custom_call.1} parent=5 // pred_fallthru
        _
    $region6: #{tpu_custom_call.1} parent=1 // loop_footer
      %s19 = sadd.s32 1, %s15
    $region7: #{tpu_custom_call.1} parent=1 // loop_footer_branch
      %14 = sbr.rel target = $region3
    $region8: #{tpu_custom_call.1} parent=1 // loop_exit
      _
    %1250 = vsyncpa [#allocation4], 1
    %s1251 = scalar_lea.sflag [#allocation4], 1
    %1252 = vsyncpa %s1251, 1
    %1253 = vsyncpa [#allocation7], 1
    %s1254 = scalar_lea.sflag [#allocation7], 1
    %1255 = vsyncpa %s1254, 1
    %1256 = vsyncpa [#allocation5], 1
    %s1257 = scalar_lea.sflag [#allocation5], 1
    %1258 = vsyncpa %s1257, 1

</llo_original>
